<compile_context>
chip_gen: v5e
topology: v5e:2x2
jax: 0.10.0
libtpu: 0.0.40
codegen_flags: <defaults>
</compile_context>

<pallas_src>
import functools

import jax
import jax.numpy as jnp
from jax.experimental import pallas as pl
from jax.experimental.pallas import tpu as pltpu


# TODO(synk): torch.nn.Dropout with p>0 is not implemented (module default dropout=0 is identity).
def _hero_ae_kernel(*refs, dims):
    """refs = (x_ref, w0,b0, w1,b1, ..., w_heads, b_heads, o_ref).

    x_ref     : (tb, d_in)      f32 VMEM tile of the batch
    w_i, b_i  : full-block VMEM weights / (1, d) biases of encoder+decoder layers
    w_heads   : (d_dec_last, sum(dims)) packed head weights
    b_heads   : (1, sum(dims))          packed head biases
    o_ref     : (tb, sum(dims)) output tile
    """
    x_ref = refs[0]
    o_ref = refs[-1]
    wh_ref, bh_ref = refs[-3], refs[-2]
    layer_refs = refs[1:-3]

    h = x_ref[...].astype(jnp.float32)

    # Encoder + decoder: Linear + ReLU chain (all MXU matmuls, f32 accumulation).
    for li in range(len(layer_refs) // 2):
        w = layer_refs[2 * li][...]
        b = layer_refs[2 * li + 1][...]
        h = jnp.maximum(
            jnp.dot(h, w, preferred_element_type=jnp.float32) + b, 0.0
        )

    # Packed head logits: one matmul for all heads.
    logits = jnp.dot(h, wh_ref[...], preferred_element_type=jnp.float32) + bh_ref[...]

    # Per-head softmax over its own segment, then one lane-dense store of the concat.
    outs = []
    off = 0
    for d in dims:
        seg = logits[:, off:off + d]
        seg = seg - jnp.max(seg, axis=-1, keepdims=True)
        e = jnp.exp(seg)
        outs.append(e / jnp.sum(e, axis=-1, keepdims=True))
        off += d
    o_ref[...] = jnp.concatenate(outs, axis=-1).astype(o_ref.dtype)


def hero_ae_forward(x, layers, head, dims, *, block_b=256):
    """Pallas implementation of HeroAEModel.forward.

    x      : (B, sum(dims)) activations
    layers : list of (w, b) for encoder+decoder Linear layers (b has shape (1, d))
    head   : (w_heads, b_heads) packed across all heads
    dims   : per-head output sizes (concat order)
    """
    B, d_in = x.shape
    assert d_in == sum(dims), "input dim must equal sum(dims)"
    wh, bh = head
    d_out = wh.shape[1]
    assert d_out == sum(dims)

    # Batch tile: as large as practical, multiple of 8 (sublane rule) unless it is the full batch.
    tb = min(block_b, B)
    if tb != B and tb % 8 != 0:
        tb = max(8, (tb // 8) * 8)
    pad = (-B) % tb
    xp = jnp.pad(x, ((0, pad), (0, 0))) if pad else x  # only pad when strictly needed
    grid = (xp.shape[0] // tb,)

    flat_params = []
    in_specs = [pl.BlockSpec((tb, d_in), lambda i: (i, 0))]
    for (w, b) in layers:
        flat_params += [w, b]
        in_specs += [
            pl.BlockSpec(w.shape, lambda i: (0, 0)),
            pl.BlockSpec(b.shape, lambda i: (0, 0)),
        ]
    flat_params += [wh, bh]
    in_specs += [
        pl.BlockSpec(wh.shape, lambda i: (0, 0)),
        pl.BlockSpec(bh.shape, lambda i: (0, 0)),
    ]

    out = pl.pallas_call(
        functools.partial(_hero_ae_kernel, dims=tuple(dims)),
        out_shape=jax.ShapeDtypeStruct((xp.shape[0], d_out), x.dtype),
        grid=grid,
        in_specs=in_specs,
        out_specs=pl.BlockSpec((tb, d_out), lambda i: (i, 0)),
        compiler_params=pltpu.CompilerParams(
            dimension_semantics=("parallel",),  # batch rows independent -> megacore on v7x
        ),
    )(xp, *flat_params)
    return out[:B] if pad else out


# ----------------------------------------------------------------------------
# Parameter init + pure-JAX reference
# ----------------------------------------------------------------------------
def init_params(key, dims, d_encoder=(128, 64, 32), d_decoder=(32, 64, 128),
                dtype=jnp.float32):
    d_input = sum(dims)
    assert d_encoder[-1] == d_decoder[0]
    enc_dims = [d_input] + list(d_encoder)
    dec_dims = list(d_decoder)
    layer_dims = list(zip(enc_dims[:-1], enc_dims[1:])) + list(zip(dec_dims[:-1], dec_dims[1:]))

    keys = jax.random.split(key, len(layer_dims) + 1)
    layers = []
    for k, (a, b) in zip(keys[:-1], layer_dims):
        kw, kb = jax.random.split(k)
        w = jax.random.normal(kw, (a, b), dtype) * (1.0 / jnp.sqrt(a))
        bias = jax.random.normal(kb, (1, b), dtype) * 0.01
        layers.append((w, bias))

    # Heads packed into a single (d_decoder[-1], sum(dims)) matrix (concat order == dims order).
    kw, kb = jax.random.split(keys[-1])
    wh = jax.random.normal(kw, (d_decoder[-1], sum(dims)), dtype) * (1.0 / jnp.sqrt(d_decoder[-1]))
    bh = jax.random.normal(kb, (1, sum(dims)), dtype) * 0.01
    return layers, (wh, bh)


def hero_ae_ref(x, layers, head, dims):
    h = x.astype(jnp.float32)
    for w, b in layers:
        h = jax.nn.relu(
            jnp.dot(h, w, precision=jax.lax.Precision.HIGHEST,
                    preferred_element_type=jnp.float32) + b)
    wh, bh = head
    logits = jnp.dot(h, wh, precision=jax.lax.Precision.HIGHEST,
                     preferred_element_type=jnp.float32) + bh
    outs, off = [], 0
    for d in dims:
        outs.append(jax.nn.softmax(logits[:, off:off + d], axis=-1))
        off += d
    return jnp.concatenate(outs, axis=-1).astype(x.dtype)


if __name__ == "__main__":
    dims = (16, 16, 16, 16)          # per-head vocab sizes; d_input = sum(dims) = 64
    batch = 128

    key = jax.random.PRNGKey(0)
    kx, kp = jax.random.split(key)
    x = jax.random.normal(kx, (batch, sum(dims)), jnp.float32)
    layers, head = init_params(kp, dims)

    out = jax.block_until_ready(hero_ae_forward(x, layers, head, dims, block_b=64))
    ref = jax.block_until_ready(hero_ae_ref(x, layers, head, dims))

    assert out.shape == (batch, sum(dims)), out.shape
    assert jnp.allclose(out, ref, rtol=1e-4, atol=1e-5), float(jnp.max(jnp.abs(out - ref)))
    # each head's softmax segment sums to 1
    seg_sums = out.reshape(batch, len(dims), dims[0]).sum(-1)
    assert jnp.allclose(seg_sums, 1.0, atol=1e-5)
    print("KERNEL_OK")
</pallas_src>

<mosaic_0001>
module attributes {stable_mosaic.version = 11 : i64} {
  func.func @_hero_ae_kernel(%arg0: i32, %arg1: memref<64x64xf32, #tpu.memory_space<vmem>>, %arg2: memref<64x128xf32, #tpu.memory_space<vmem>>, %arg3: memref<1x128xf32, #tpu.memory_space<vmem>>, %arg4: memref<128x64xf32, #tpu.memory_space<vmem>>, %arg5: memref<1x64xf32, #tpu.memory_space<vmem>>, %arg6: memref<64x32xf32, #tpu.memory_space<vmem>>, %arg7: memref<1x32xf32, #tpu.memory_space<vmem>>, %arg8: memref<32x64xf32, #tpu.memory_space<vmem>>, %arg9: memref<1x64xf32, #tpu.memory_space<vmem>>, %arg10: memref<64x128xf32, #tpu.memory_space<vmem>>, %arg11: memref<1x128xf32, #tpu.memory_space<vmem>>, %arg12: memref<128x64xf32, #tpu.memory_space<vmem>>, %arg13: memref<1x64xf32, #tpu.memory_space<vmem>>, %arg14: memref<64x64xf32, #tpu.memory_space<vmem>>) attributes {dimension_semantics = [#tpu.dimension_semantics<parallel>], iteration_bounds = array<i64: 2>, scalar_prefetch = 0 : i64, scratch_operands = 0 : i64, tpu.core_type = #tpu.core_type<tc>, window_params = [{transform_indices = @transform_0, window_bounds = array<i64: 64, 64>}, {pipeline_mode = #tpu.pipeline_mode<synchronous>, transform_indices = @transform_1, window_bounds = array<i64: 64, 128>}, {pipeline_mode = #tpu.pipeline_mode<synchronous>, transform_indices = @transform_2, window_bounds = array<i64: 1, 128>}, {pipeline_mode = #tpu.pipeline_mode<synchronous>, transform_indices = @transform_3, window_bounds = array<i64: 128, 64>}, {pipeline_mode = #tpu.pipeline_mode<synchronous>, transform_indices = @transform_4, window_bounds = array<i64: 1, 64>}, {pipeline_mode = #tpu.pipeline_mode<synchronous>, transform_indices = @transform_5, window_bounds = array<i64: 64, 32>}, {pipeline_mode = #tpu.pipeline_mode<synchronous>, transform_indices = @transform_6, window_bounds = array<i64: 1, 32>}, {pipeline_mode = #tpu.pipeline_mode<synchronous>, transform_indices = @transform_7, window_bounds = array<i64: 32, 64>}, {pipeline_mode = #tpu.pipeline_mode<synchronous>, transform_indices = @transform_8, window_bounds = array<i64: 1, 64>}, {pipeline_mode = #tpu.pipeline_mode<synchronous>, transform_indices = @transform_9, window_bounds = array<i64: 64, 128>}, {pipeline_mode = #tpu.pipeline_mode<synchronous>, transform_indices = @transform_10, window_bounds = array<i64: 1, 128>}, {pipeline_mode = #tpu.pipeline_mode<synchronous>, transform_indices = @transform_11, window_bounds = array<i64: 128, 64>}, {pipeline_mode = #tpu.pipeline_mode<synchronous>, transform_indices = @transform_12, window_bounds = array<i64: 1, 64>}, {transform_indices = @transform_13, window_bounds = array<i64: 64, 64>}]} {
    %c0 = arith.constant 0 : index
    %c0_0 = arith.constant 0 : index
    %0 = vector.load %arg1[%c0, %c0_0] : memref<64x64xf32, #tpu.memory_space<vmem>>, vector<64x64xf32>
    %c0_1 = arith.constant 0 : index
    %c0_2 = arith.constant 0 : index
    %1 = vector.load %arg2[%c0_1, %c0_2] : memref<64x128xf32, #tpu.memory_space<vmem>>, vector<64x128xf32>
    %c0_3 = arith.constant 0 : index
    %c0_4 = arith.constant 0 : index
    %2 = vector.load %arg3[%c0_3, %c0_4] : memref<1x128xf32, #tpu.memory_space<vmem>>, vector<1x128xf32>
    %cst = arith.constant dense<0.000000e+00> : vector<64x128xf32>
    %3 = tpu.matmul %0, %1, %cst {dimension_numbers = #tpu.dot_dimension_numbers<[1], [0], [0], [1], [0, 0, 1, 1], [], []>} : vector<64x64xf32>, vector<64x128xf32>, vector<64x128xf32> -> vector<64x128xf32>
    %4 = vector.broadcast %2 : vector<1x128xf32> to vector<64x128xf32>
    %5 = arith.addf %3, %4 : vector<64x128xf32>
    %cst_5 = arith.constant 0.000000e+00 : f32
    %6 = vector.broadcast %cst_5 : f32 to vector<64x128xf32>
    %7 = arith.maximumf %5, %6 : vector<64x128xf32>
    %c0_6 = arith.constant 0 : index
    %c0_7 = arith.constant 0 : index
    %8 = vector.load %arg4[%c0_6, %c0_7] : memref<128x64xf32, #tpu.memory_space<vmem>>, vector<128x64xf32>
    %c0_8 = arith.constant 0 : index
    %c0_9 = arith.constant 0 : index
    %9 = vector.load %arg5[%c0_8, %c0_9] : memref<1x64xf32, #tpu.memory_space<vmem>>, vector<1x64xf32>
    %cst_10 = arith.constant dense<0.000000e+00> : vector<64x64xf32>
    %10 = tpu.matmul %7, %8, %cst_10 {dimension_numbers = #tpu.dot_dimension_numbers<[1], [0], [0], [1], [0, 0, 1, 1], [], []>} : vector<64x128xf32>, vector<128x64xf32>, vector<64x64xf32> -> vector<64x64xf32>
    %11 = vector.broadcast %9 : vector<1x64xf32> to vector<64x64xf32>
    %12 = arith.addf %10, %11 : vector<64x64xf32>
    %cst_11 = arith.constant 0.000000e+00 : f32
    %13 = vector.broadcast %cst_11 : f32 to vector<64x64xf32>
    %14 = arith.maximumf %12, %13 : vector<64x64xf32>
    %c0_12 = arith.constant 0 : index
    %c0_13 = arith.constant 0 : index
    %15 = vector.load %arg6[%c0_12, %c0_13] : memref<64x32xf32, #tpu.memory_space<vmem>>, vector<64x32xf32>
    %c0_14 = arith.constant 0 : index
    %c0_15 = arith.constant 0 : index
    %16 = vector.load %arg7[%c0_14, %c0_15] : memref<1x32xf32, #tpu.memory_space<vmem>>, vector<1x32xf32>
    %cst_16 = arith.constant dense<0.000000e+00> : vector<64x32xf32>
    %17 = tpu.matmul %14, %15, %cst_16 {dimension_numbers = #tpu.dot_dimension_numbers<[1], [0], [0], [1], [0, 0, 1, 1], [], []>} : vector<64x64xf32>, vector<64x32xf32>, vector<64x32xf32> -> vector<64x32xf32>
    %18 = vector.broadcast %16 : vector<1x32xf32> to vector<64x32xf32>
    %19 = arith.addf %17, %18 : vector<64x32xf32>
    %cst_17 = arith.constant 0.000000e+00 : f32
    %20 = vector.broadcast %cst_17 : f32 to vector<64x32xf32>
    %21 = arith.maximumf %19, %20 : vector<64x32xf32>
    %c0_18 = arith.constant 0 : index
    %c0_19 = arith.constant 0 : index
    %22 = vector.load %arg8[%c0_18, %c0_19] : memref<32x64xf32, #tpu.memory_space<vmem>>, vector<32x64xf32>
    %c0_20 = arith.constant 0 : index
    %c0_21 = arith.constant 0 : index
    %23 = vector.load %arg9[%c0_20, %c0_21] : memref<1x64xf32, #tpu.memory_space<vmem>>, vector<1x64xf32>
    %cst_22 = arith.constant dense<0.000000e+00> : vector<64x64xf32>
    %24 = tpu.matmul %21, %22, %cst_22 {dimension_numbers = #tpu.dot_dimension_numbers<[1], [0], [0], [1], [0, 0, 1, 1], [], []>} : vector<64x32xf32>, vector<32x64xf32>, vector<64x64xf32> -> vector<64x64xf32>
    %25 = vector.broadcast %23 : vector<1x64xf32> to vector<64x64xf32>
    %26 = arith.addf %24, %25 : vector<64x64xf32>
    %cst_23 = arith.constant 0.000000e+00 : f32
    %27 = vector.broadcast %cst_23 : f32 to vector<64x64xf32>
    %28 = arith.maximumf %26, %27 : vector<64x64xf32>
    %c0_24 = arith.constant 0 : index
    %c0_25 = arith.constant 0 : index
    %29 = vector.load %arg10[%c0_24, %c0_25] : memref<64x128xf32, #tpu.memory_space<vmem>>, vector<64x128xf32>
    %c0_26 = arith.constant 0 : index
    %c0_27 = arith.constant 0 : index
    %30 = vector.load %arg11[%c0_26, %c0_27] : memref<1x128xf32, #tpu.memory_space<vmem>>, vector<1x128xf32>
    %cst_28 = arith.constant dense<0.000000e+00> : vector<64x128xf32>
    %31 = tpu.matmul %28, %29, %cst_28 {dimension_numbers = #tpu.dot_dimension_numbers<[1], [0], [0], [1], [0, 0, 1, 1], [], []>} : vector<64x64xf32>, vector<64x128xf32>, vector<64x128xf32> -> vector<64x128xf32>
    %32 = vector.broadcast %30 : vector<1x128xf32> to vector<64x128xf32>
    %33 = arith.addf %31, %32 : vector<64x128xf32>
    %cst_29 = arith.constant 0.000000e+00 : f32
    %34 = vector.broadcast %cst_29 : f32 to vector<64x128xf32>
    %35 = arith.maximumf %33, %34 : vector<64x128xf32>
    %c0_30 = arith.constant 0 : index
    %c0_31 = arith.constant 0 : index
    %36 = vector.load %arg12[%c0_30, %c0_31] : memref<128x64xf32, #tpu.memory_space<vmem>>, vector<128x64xf32>
    %cst_32 = arith.constant dense<0.000000e+00> : vector<64x64xf32>
    %37 = tpu.matmul %35, %36, %cst_32 {dimension_numbers = #tpu.dot_dimension_numbers<[1], [0], [0], [1], [0, 0, 1, 1], [], []>} : vector<64x128xf32>, vector<128x64xf32>, vector<64x64xf32> -> vector<64x64xf32>
    %c0_33 = arith.constant 0 : index
    %c0_34 = arith.constant 0 : index
    %38 = vector.load %arg13[%c0_33, %c0_34] : memref<1x64xf32, #tpu.memory_space<vmem>>, vector<1x64xf32>
    %39 = vector.broadcast %38 : vector<1x64xf32> to vector<64x64xf32>
    %40 = arith.addf %37, %39 : vector<64x64xf32>
    %41 = vector.extract_strided_slice %40 {offsets = [0, 0], sizes = [64, 16], strides = [1, 1]} : vector<64x64xf32> to vector<64x16xf32>
    %cst_35 = arith.constant dense<0xFF800000> : vector<64xf32>
    %42 = vector.multi_reduction <maximumf>, %41, %cst_35 [1] : vector<64x16xf32> to vector<64xf32>
    %43 = vector.shape_cast %42 : vector<64xf32> to vector<64x1xf32>
    %44 = vector.broadcast %43 : vector<64x1xf32> to vector<64x16xf32>
    %45 = arith.subf %41, %44 : vector<64x16xf32>
    %46 = math.exp %45 : vector<64x16xf32>
    %cst_36 = arith.constant dense<0.000000e+00> : vector<64xf32>
    %47 = vector.multi_reduction <add>, %46, %cst_36 [1] : vector<64x16xf32> to vector<64xf32>
    %48 = vector.shape_cast %47 : vector<64xf32> to vector<64x1xf32>
    %49 = vector.broadcast %48 : vector<64x1xf32> to vector<64x16xf32>
    %50 = arith.divf %46, %49 : vector<64x16xf32>
    %51 = vector.extract_strided_slice %40 {offsets = [0, 16], sizes = [64, 16], strides = [1, 1]} : vector<64x64xf32> to vector<64x16xf32>
    %cst_37 = arith.constant dense<0xFF800000> : vector<64xf32>
    %52 = vector.multi_reduction <maximumf>, %51, %cst_37 [1] : vector<64x16xf32> to vector<64xf32>
    %53 = vector.shape_cast %52 : vector<64xf32> to vector<64x1xf32>
    %54 = vector.broadcast %53 : vector<64x1xf32> to vector<64x16xf32>
    %55 = arith.subf %51, %54 : vector<64x16xf32>
    %56 = math.exp %55 : vector<64x16xf32>
    %cst_38 = arith.constant dense<0.000000e+00> : vector<64xf32>
    %57 = vector.multi_reduction <add>, %56, %cst_38 [1] : vector<64x16xf32> to vector<64xf32>
    %58 = vector.shape_cast %57 : vector<64xf32> to vector<64x1xf32>
    %59 = vector.broadcast %58 : vector<64x1xf32> to vector<64x16xf32>
    %60 = arith.divf %56, %59 : vector<64x16xf32>
    %61 = vector.extract_strided_slice %40 {offsets = [0, 32], sizes = [64, 16], strides = [1, 1]} : vector<64x64xf32> to vector<64x16xf32>
    %cst_39 = arith.constant dense<0xFF800000> : vector<64xf32>
    %62 = vector.multi_reduction <maximumf>, %61, %cst_39 [1] : vector<64x16xf32> to vector<64xf32>
    %63 = vector.shape_cast %62 : vector<64xf32> to vector<64x1xf32>
    %64 = vector.broadcast %63 : vector<64x1xf32> to vector<64x16xf32>
    %65 = arith.subf %61, %64 : vector<64x16xf32>
    %66 = math.exp %65 : vector<64x16xf32>
    %cst_40 = arith.constant dense<0.000000e+00> : vector<64xf32>
    %67 = vector.multi_reduction <add>, %66, %cst_40 [1] : vector<64x16xf32> to vector<64xf32>
    %68 = vector.shape_cast %67 : vector<64xf32> to vector<64x1xf32>
    %69 = vector.broadcast %68 : vector<64x1xf32> to vector<64x16xf32>
    %70 = arith.divf %66, %69 : vector<64x16xf32>
    %71 = vector.extract_strided_slice %40 {offsets = [0, 48], sizes = [64, 16], strides = [1, 1]} : vector<64x64xf32> to vector<64x16xf32>
    %cst_41 = arith.constant dense<0xFF800000> : vector<64xf32>
    %72 = vector.multi_reduction <maximumf>, %71, %cst_41 [1] : vector<64x16xf32> to vector<64xf32>
    %73 = vector.shape_cast %72 : vector<64xf32> to vector<64x1xf32>
    %74 = vector.broadcast %73 : vector<64x1xf32> to vector<64x16xf32>
    %75 = arith.subf %71, %74 : vector<64x16xf32>
    %76 = math.exp %75 : vector<64x16xf32>
    %cst_42 = arith.constant dense<0.000000e+00> : vector<64xf32>
    %77 = vector.multi_reduction <add>, %76, %cst_42 [1] : vector<64x16xf32> to vector<64xf32>
    %78 = vector.shape_cast %77 : vector<64xf32> to vector<64x1xf32>
    %79 = vector.broadcast %78 : vector<64x1xf32> to vector<64x16xf32>
    %80 = arith.divf %76, %79 : vector<64x16xf32>
    %81 = tpu.concatenate %50, %60, %70, %80 in 1 : vector<64x16xf32>, vector<64x16xf32>, vector<64x16xf32>, vector<64x16xf32> -> vector<64x64xf32>
    %c0_43 = arith.constant 0 : index
    %c0_44 = arith.constant 0 : index
    %82 = vector.load %arg14[%c0_43, %c0_44] : memref<64x64xf32, #tpu.memory_space<vmem>>, vector<64x64xf32>
    tpu.vector_store %arg14[%c0_43, %c0_44], %81 {strides = array<i32>} : memref<64x64xf32, #tpu.memory_space<vmem>>, vector<64x64xf32>,
    return
  }
  func.func @transform_0(%arg0: i32) -> (i32, i32) {
    %c0_i32 = arith.constant 0 : i32
    %c0_i32_0 = arith.constant 0 : i32
    return %arg0, %c0_i32 : i32, i32
  }
  func.func @transform_1(%arg0: i32) -> (i32, i32) {
    %c0_i32 = arith.constant 0 : i32
    %c0_i32_0 = arith.constant 0 : i32
    %c0_i32_1 = arith.constant 0 : i32
    return %c0_i32, %c0_i32_0 : i32, i32
  }
  func.func @transform_2(%arg0: i32) -> (i32, i32) {
    %c0_i32 = arith.constant 0 : i32
    %c0_i32_0 = arith.constant 0 : i32
    %c0_i32_1 = arith.constant 0 : i32
    return %c0_i32, %c0_i32_0 : i32, i32
  }
  func.func @transform_3(%arg0: i32) -> (i32, i32) {
    %c0_i32 = arith.constant 0 : i32
    %c0_i32_0 = arith.constant 0 : i32
    %c0_i32_1 = arith.constant 0 : i32
    return %c0_i32, %c0_i32_0 : i32, i32
  }
  func.func @transform_4(%arg0: i32) -> (i32, i32) {
    %c0_i32 = arith.constant 0 : i32
    %c0_i32_0 = arith.constant 0 : i32
    %c0_i32_1 = arith.constant 0 : i32
    return %c0_i32, %c0_i32_0 : i32, i32
  }
  func.func @transform_5(%arg0: i32) -> (i32, i32) {
    %c0_i32 = arith.constant 0 : i32
    %c0_i32_0 = arith.constant 0 : i32
    %c0_i32_1 = arith.constant 0 : i32
    return %c0_i32, %c0_i32_0 : i32, i32
  }
  func.func @transform_6(%arg0: i32) -> (i32, i32) {
    %c0_i32 = arith.constant 0 : i32
    %c0_i32_0 = arith.constant 0 : i32
    %c0_i32_1 = arith.constant 0 : i32
    return %c0_i32, %c0_i32_0 : i32, i32
  }
  func.func @transform_7(%arg0: i32) -> (i32, i32) {
    %c0_i32 = arith.constant 0 : i32
    %c0_i32_0 = arith.constant 0 : i32
    %c0_i32_1 = arith.constant 0 : i32
    return %c0_i32, %c0_i32_0 : i32, i32
  }
  func.func @transform_8(%arg0: i32) -> (i32, i32) {
    %c0_i32 = arith.constant 0 : i32
    %c0_i32_0 = arith.constant 0 : i32
    %c0_i32_1 = arith.constant 0 : i32
    return %c0_i32, %c0_i32_0 : i32, i32
  }
  func.func @transform_9(%arg0: i32) -> (i32, i32) {
    %c0_i32 = arith.constant 0 : i32
    %c0_i32_0 = arith.constant 0 : i32
    %c0_i32_1 = arith.constant 0 : i32
    return %c0_i32, %c0_i32_0 : i32, i32
  }
  func.func @transform_10(%arg0: i32) -> (i32, i32) {
    %c0_i32 = arith.constant 0 : i32
    %c0_i32_0 = arith.constant 0 : i32
    %c0_i32_1 = arith.constant 0 : i32
    return %c0_i32, %c0_i32_0 : i32, i32
  }
  func.func @transform_11(%arg0: i32) -> (i32, i32) {
    %c0_i32 = arith.constant 0 : i32
    %c0_i32_0 = arith.constant 0 : i32
    %c0_i32_1 = arith.constant 0 : i32
    return %c0_i32, %c0_i32_0 : i32, i32
  }
  func.func @transform_12(%arg0: i32) -> (i32, i32) {
    %c0_i32 = arith.constant 0 : i32
    %c0_i32_0 = arith.constant 0 : i32
    %c0_i32_1 = arith.constant 0 : i32
    return %c0_i32, %c0_i32_0 : i32, i32
  }
  func.func @transform_13(%arg0: i32) -> (i32, i32) {
    %c0_i32 = arith.constant 0 : i32
    %c0_i32_0 = arith.constant 0 : i32
    return %arg0, %c0_i32 : i32, i32
  }
}

</mosaic_0001>

<llo_original>
// kernel: tpu_custom_call.1
$region0: #{tpu_custom_call.1}
  #allocation0 [shape = 'u32[]', space=smem, size = 0x4, offset = 0x4, fixed_abs, tag = 'smem constant byte address 0x4 - core index']
  #allocation1 [shape = 'u32[72,128]{1,0:T(1,128)}', space=vmem, size = 0x9000, scoped, tag = 'internal scratch']
  %s0 = inlined_call_operand.vmem [shape: f32[128,64], index: 0, kind: input, shape index: {}]
  %s1 = inlined_call_operand.vmem [shape: f32[64,128], index: 1, kind: input, shape index: {}]
  %s2 = inlined_call_operand.vmem [shape: f32[1,128], index: 2, kind: input, shape index: {}]
  %s3 = inlined_call_operand.vmem [shape: f32[128,64], index: 3, kind: input, shape index: {}]
  %s4 = inlined_call_operand.vmem [shape: f32[1,64], index: 4, kind: input, shape index: {}]
  %s5 = inlined_call_operand.vmem [shape: f32[64,32], index: 5, kind: input, shape index: {}]
  %s6 = inlined_call_operand.vmem [shape: f32[1,32], index: 6, kind: input, shape index: {}]
  %s7 = inlined_call_operand.vmem [shape: f32[32,64], index: 7, kind: input, shape index: {}]
  %s8 = inlined_call_operand.vmem [shape: f32[1,64], index: 8, kind: input, shape index: {}]
  %s9 = inlined_call_operand.vmem [shape: f32[64,128], index: 9, kind: input, shape index: {}]
  %s10 = inlined_call_operand.vmem [shape: f32[1,128], index: 10, kind: input, shape index: {}]
  %s11 = inlined_call_operand.vmem [shape: f32[128,64], index: 11, kind: input, shape index: {}]
  %s12 = inlined_call_operand.vmem [shape: f32[1,64], index: 12, kind: input, shape index: {}]
  %s13 = inlined_call_operand.vmem [shape: f32[128,64], index: 13, kind: output, shape index: {}]
  %s14 = sld [smem:[#allocation0]]
  $region85: #{tpu_custom_call.1} parent=0
    _
  %s16 = ssub.s32 1, %s14
  %s17 = scalar_select 0, %s16, %s14
  loop: start=0, step=1, limit=4
  $region2: #{tpu_custom_call.1} parent=0 // loop_pre_header
    _
  $region3: #{tpu_custom_call.1} parent=0 // loop_header
    %s19 = sphi 0, %s23
    %p20 = scmp.ge.s32.totalorder %s19, 4
    %s29 = sphi 0, %s31
    %s32 = sphi 0, %s29
    %s33 = sphi 0, %s32
    %s49 = sphi 0, %s33
    %s53 = sphi 0, %s53
    %s55 = sphi 0, %s53
    %s56 = sphi 0, %s55
    %s70 = sphi 0, %s56
    %s74 = sphi 0, %s74
    %s76 = sphi 0, %s74
    %s77 = sphi 0, %s76
    %s91 = sphi 0, %s77
    %s95 = sphi 0, %s95
    %s97 = sphi 0, %s95
    %s98 = sphi 0, %s97
    %s112 = sphi 0, %s98
    %s116 = sphi 0, %s116
    %s118 = sphi 0, %s116
    %s119 = sphi 0, %s118
    %s133 = sphi 0, %s119
    %s137 = sphi 0, %s137
    %s139 = sphi 0, %s137
    %s140 = sphi 0, %s139
    %s154 = sphi 0, %s140
    %s158 = sphi 0, %s158
    %s160 = sphi 0, %s158
    %s161 = sphi 0, %s160
    %s175 = sphi 0, %s161
    %s179 = sphi 0, %s179
    %s181 = sphi 0, %s179
    %s182 = sphi 0, %s181
    %s196 = sphi 0, %s182
    %s200 = sphi 0, %s200
    %s202 = sphi 0, %s200
    %s203 = sphi 0, %s202
    %s217 = sphi 0, %s203
    %s221 = sphi 0, %s221
    %s223 = sphi 0, %s221
    %s224 = sphi 0, %s223
    %s238 = sphi 0, %s224
    %s242 = sphi 0, %s242
    %s244 = sphi 0, %s242
    %s245 = sphi 0, %s244
    %s259 = sphi 0, %s245
    %s263 = sphi 0, %s263
    %s265 = sphi 0, %s263
    %s266 = sphi 0, %s265
    %s280 = sphi 0, %s266
    %s284 = sphi 0, %s284
    %s286 = sphi 0, %s284
    %s287 = sphi 0, %s286
    %s301 = sphi 0, %s287
    %s307 = sphi 0, %s309
    %s310 = sphi 0, %s307
    %s311 = sphi 0, %s310
    %s327 = sphi 0, %s311
  $region4: #{tpu_custom_call.1} parent=0 // loop_header_branch
    %22 = sbr.rel (%p20) target = $region8
  $region5: #{tpu_custom_call.1} parent=0 // loop_body
    %s24 = ssub.s32 %s19, 1
    %s25 = ssub.s32 %s19, 2
    %s26 = sadd.s32 %s19, 1
    %s27 = ssub.s32 %s19, %s26
    %p28 = scmp.eq.s32.totalorder %s27, 0
    %s30 = sadd.s32 %s29, 1
    %s31 = scalar_select %p28, %s29, %s30
    %p34 = pneg %p28
    %p35 = scmp.eq.s32.totalorder %s19, 1
    %p36 = por %p34, %p35
    %p37 = scmp.ne.s32.totalorder %s29, %s32
    %p38 = scmp.eq.s32.totalorder %s19, 0
    %p39 = por %p37, %p38
    %p40 = scmp.ne.s32.totalorder %s29, %s32
    %p41 = scmp.eq.s32.totalorder %s24, 1
    %p42 = por %p40, %p41
    %p43 = scmp.ne.s32.totalorder %s32, %s33
    %p44 = scmp.eq.s32.totalorder %s24, 0
    %p45 = por %p43, %p44
    %p46 = scmp.ne.s32.totalorder %s32, %s33
    %p47 = scmp.eq.s32.totalorder %s25, 1
    %p48 = por %p46, %p47
    %p50 = scmp.ne.s32.totalorder %s33, %s49
    %p51 = scmp.eq.s32.totalorder %s25, 0
    %p52 = por %p50, %p51
    %s54 = sadd.s32 %s53, 1
    %p57 = scmp.eq.s32.totalorder %s19, 1
    %p58 = scmp.ne.s32.totalorder %s53, %s55
    %p59 = scmp.eq.s32.totalorder %s19, 0
    %p60 = por %p58, %p59
    %p61 = scmp.ne.s32.totalorder %s53, %s55
    %p62 = scmp.eq.s32.totalorder %s24, 1
    %p63 = por %p61, %p62
    %p64 = scmp.ne.s32.totalorder %s55, %s56
    %p65 = scmp.eq.s32.totalorder %s24, 0
    %p66 = por %p64, %p65
    %p67 = scmp.ne.s32.totalorder %s55, %s56
    %p68 = scmp.eq.s32.totalorder %s25, 1
    %p69 = por %p67, %p68
    %p71 = scmp.ne.s32.totalorder %s56, %s70
    %p72 = scmp.eq.s32.totalorder %s25, 0
    %p73 = por %p71, %p72
    %s75 = sadd.s32 %s74, 1
    %p78 = scmp.eq.s32.totalorder %s19, 1
    %p79 = scmp.ne.s32.totalorder %s74, %s76
    %p80 = scmp.eq.s32.totalorder %s19, 0
    %p81 = por %p79, %p80
    %p82 = scmp.ne.s32.totalorder %s74, %s76
    %p83 = scmp.eq.s32.totalorder %s24, 1
    %p84 = por %p82, %p83
    %p85 = scmp.ne.s32.totalorder %s76, %s77
    %p86 = scmp.eq.s32.totalorder %s24, 0
    %p87 = por %p85, %p86
    %p88 = scmp.ne.s32.totalorder %s76, %s77
    %p89 = scmp.eq.s32.totalorder %s25, 1
    %p90 = por %p88, %p89
    %p92 = scmp.ne.s32.totalorder %s77, %s91
    %p93 = scmp.eq.s32.totalorder %s25, 0
    %p94 = por %p92, %p93
    %s96 = sadd.s32 %s95, 1
    %p99 = scmp.eq.s32.totalorder %s19, 1
    %p100 = scmp.ne.s32.totalorder %s95, %s97
    %p101 = scmp.eq.s32.totalorder %s19, 0
    %p102 = por %p100, %p101
    %p103 = scmp.ne.s32.totalorder %s95, %s97
    %p104 = scmp.eq.s32.totalorder %s24, 1
    %p105 = por %p103, %p104
    %p106 = scmp.ne.s32.totalorder %s97, %s98
    %p107 = scmp.eq.s32.totalorder %s24, 0
    %p108 = por %p106, %p107
    %p109 = scmp.ne.s32.totalorder %s97, %s98
    %p110 = scmp.eq.s32.totalorder %s25, 1
    %p111 = por %p109, %p110
    %p113 = scmp.ne.s32.totalorder %s98, %s112
    %p114 = scmp.eq.s32.totalorder %s25, 0
    %p115 = por %p113, %p114
    %s117 = sadd.s32 %s116, 1
    %p120 = scmp.eq.s32.totalorder %s19, 1
    %p121 = scmp.ne.s32.totalorder %s116, %s118
    %p122 = scmp.eq.s32.totalorder %s19, 0
    %p123 = por %p121, %p122
    %p124 = scmp.ne.s32.totalorder %s116, %s118
    %p125 = scmp.eq.s32.totalorder %s24, 1
    %p126 = por %p124, %p125
    %p127 = scmp.ne.s32.totalorder %s118, %s119
    %p128 = scmp.eq.s32.totalorder %s24, 0
    %p129 = por %p127, %p128
    %p130 = scmp.ne.s32.totalorder %s118, %s119
    %p131 = scmp.eq.s32.totalorder %s25, 1
    %p132 = por %p130, %p131
    %p134 = scmp.ne.s32.totalorder %s119, %s133
    %p135 = scmp.eq.s32.totalorder %s25, 0
    %p136 = por %p134, %p135
    %s138 = sadd.s32 %s137, 1
    %p141 = scmp.eq.s32.totalorder %s19, 1
    %p142 = scmp.ne.s32.totalorder %s137, %s139
    %p143 = scmp.eq.s32.totalorder %s19, 0
    %p144 = por %p142, %p143
    %p145 = scmp.ne.s32.totalorder %s137, %s139
    %p146 = scmp.eq.s32.totalorder %s24, 1
    %p147 = por %p145, %p146
    %p148 = scmp.ne.s32.totalorder %s139, %s140
    %p149 = scmp.eq.s32.totalorder %s24, 0
    %p150 = por %p148, %p149
    %p151 = scmp.ne.s32.totalorder %s139, %s140
    %p152 = scmp.eq.s32.totalorder %s25, 1
    %p153 = por %p151, %p152
    %p155 = scmp.ne.s32.totalorder %s140, %s154
    %p156 = scmp.eq.s32.totalorder %s25, 0
    %p157 = por %p155, %p156
    %s159 = sadd.s32 %s158, 1
    %p162 = scmp.eq.s32.totalorder %s19, 1
    %p163 = scmp.ne.s32.totalorder %s158, %s160
    %p164 = scmp.eq.s32.totalorder %s19, 0
    %p165 = por %p163, %p164
    %p166 = scmp.ne.s32.totalorder %s158, %s160
    %p167 = scmp.eq.s32.totalorder %s24, 1
    %p168 = por %p166, %p167
    %p169 = scmp.ne.s32.totalorder %s160, %s161
    %p170 = scmp.eq.s32.totalorder %s24, 0
    %p171 = por %p169, %p170
    %p172 = scmp.ne.s32.totalorder %s160, %s161
    %p173 = scmp.eq.s32.totalorder %s25, 1
    %p174 = por %p172, %p173
    %p176 = scmp.ne.s32.totalorder %s161, %s175
    %p177 = scmp.eq.s32.totalorder %s25, 0
    %p178 = por %p176, %p177
    %s180 = sadd.s32 %s179, 1
    %p183 = scmp.eq.s32.totalorder %s19, 1
    %p184 = scmp.ne.s32.totalorder %s179, %s181
    %p185 = scmp.eq.s32.totalorder %s19, 0
    %p186 = por %p184, %p185
    %p187 = scmp.ne.s32.totalorder %s179, %s181
    %p188 = scmp.eq.s32.totalorder %s24, 1
    %p189 = por %p187, %p188
    %p190 = scmp.ne.s32.totalorder %s181, %s182
    %p191 = scmp.eq.s32.totalorder %s24, 0
    %p192 = por %p190, %p191
    %p193 = scmp.ne.s32.totalorder %s181, %s182
    %p194 = scmp.eq.s32.totalorder %s25, 1
    %p195 = por %p193, %p194
    %p197 = scmp.ne.s32.totalorder %s182, %s196
    %p198 = scmp.eq.s32.totalorder %s25, 0
    %p199 = por %p197, %p198
    %s201 = sadd.s32 %s200, 1
    %p204 = scmp.eq.s32.totalorder %s19, 1
    %p205 = scmp.ne.s32.totalorder %s200, %s202
    %p206 = scmp.eq.s32.totalorder %s19, 0
    %p207 = por %p205, %p206
    %p208 = scmp.ne.s32.totalorder %s200, %s202
    %p209 = scmp.eq.s32.totalorder %s24, 1
    %p210 = por %p208, %p209
    %p211 = scmp.ne.s32.totalorder %s202, %s203
    %p212 = scmp.eq.s32.totalorder %s24, 0
    %p213 = por %p211, %p212
    %p214 = scmp.ne.s32.totalorder %s202, %s203
    %p215 = scmp.eq.s32.totalorder %s25, 1
    %p216 = por %p214, %p215
    %p218 = scmp.ne.s32.totalorder %s203, %s217
    %p219 = scmp.eq.s32.totalorder %s25, 0
    %p220 = por %p218, %p219
    %s222 = sadd.s32 %s221, 1
    %p225 = scmp.eq.s32.totalorder %s19, 1
    %p226 = scmp.ne.s32.totalorder %s221, %s223
    %p227 = scmp.eq.s32.totalorder %s19, 0
    %p228 = por %p226, %p227
    %p229 = scmp.ne.s32.totalorder %s221, %s223
    %p230 = scmp.eq.s32.totalorder %s24, 1
    %p231 = por %p229, %p230
    %p232 = scmp.ne.s32.totalorder %s223, %s224
    %p233 = scmp.eq.s32.totalorder %s24, 0
    %p234 = por %p232, %p233
    %p235 = scmp.ne.s32.totalorder %s223, %s224
    %p236 = scmp.eq.s32.totalorder %s25, 1
    %p237 = por %p235, %p236
    %p239 = scmp.ne.s32.totalorder %s224, %s238
    %p240 = scmp.eq.s32.totalorder %s25, 0
    %p241 = por %p239, %p240
    %s243 = sadd.s32 %s242, 1
    %p246 = scmp.eq.s32.totalorder %s19, 1
    %p247 = scmp.ne.s32.totalorder %s242, %s244
    %p248 = scmp.eq.s32.totalorder %s19, 0
    %p249 = por %p247, %p248
    %p250 = scmp.ne.s32.totalorder %s242, %s244
    %p251 = scmp.eq.s32.totalorder %s24, 1
    %p252 = por %p250, %p251
    %p253 = scmp.ne.s32.totalorder %s244, %s245
    %p254 = scmp.eq.s32.totalorder %s24, 0
    %p255 = por %p253, %p254
    %p256 = scmp.ne.s32.totalorder %s244, %s245
    %p257 = scmp.eq.s32.totalorder %s25, 1
    %p258 = por %p256, %p257
    %p260 = scmp.ne.s32.totalorder %s245, %s259
    %p261 = scmp.eq.s32.totalorder %s25, 0
    %p262 = por %p260, %p261
    %s264 = sadd.s32 %s263, 1
    %p267 = scmp.eq.s32.totalorder %s19, 1
    %p268 = scmp.ne.s32.totalorder %s263, %s265
    %p269 = scmp.eq.s32.totalorder %s19, 0
    %p270 = por %p268, %p269
    %p271 = scmp.ne.s32.totalorder %s263, %s265
    %p272 = scmp.eq.s32.totalorder %s24, 1
    %p273 = por %p271, %p272
    %p274 = scmp.ne.s32.totalorder %s265, %s266
    %p275 = scmp.eq.s32.totalorder %s24, 0
    %p276 = por %p274, %p275
    %p277 = scmp.ne.s32.totalorder %s265, %s266
    %p278 = scmp.eq.s32.totalorder %s25, 1
    %p279 = por %p277, %p278
    %p281 = scmp.ne.s32.totalorder %s266, %s280
    %p282 = scmp.eq.s32.totalorder %s25, 0
    %p283 = por %p281, %p282
    %s285 = sadd.s32 %s284, 1
    %p288 = scmp.eq.s32.totalorder %s19, 1
    %p289 = scmp.ne.s32.totalorder %s284, %s286
    %p290 = scmp.eq.s32.totalorder %s19, 0
    %p291 = por %p289, %p290
    %p292 = scmp.ne.s32.totalorder %s284, %s286
    %p293 = scmp.eq.s32.totalorder %s24, 1
    %p294 = por %p292, %p293
    %p295 = scmp.ne.s32.totalorder %s286, %s287
    %p296 = scmp.eq.s32.totalorder %s24, 0
    %p297 = por %p295, %p296
    %p298 = scmp.ne.s32.totalorder %s286, %s287
    %p299 = scmp.eq.s32.totalorder %s25, 1
    %p300 = por %p298, %p299
    %p302 = scmp.ne.s32.totalorder %s287, %s301
    %p303 = scmp.eq.s32.totalorder %s25, 0
    %p304 = por %p302, %p303
    %s305 = ssub.s32 %s19, %s26
    %p306 = scmp.eq.s32.totalorder %s305, 0
    %s308 = sadd.s32 %s307, 1
    %s309 = scalar_select %p306, %s307, %s308
    %p312 = pneg %p306
    %p313 = scmp.eq.s32.totalorder %s19, 1
    %p314 = por %p312, %p313
    %p315 = scmp.ne.s32.totalorder %s307, %s310
    %p316 = scmp.eq.s32.totalorder %s19, 0
    %p317 = por %p315, %p316
    %p318 = scmp.ne.s32.totalorder %s307, %s310
    %p319 = scmp.eq.s32.totalorder %s24, 1
    %p320 = por %p318, %p319
    %p321 = scmp.ne.s32.totalorder %s310, %s311
    %p322 = scmp.eq.s32.totalorder %s24, 0
    %p323 = por %p321, %p322
    %p324 = scmp.ne.s32.totalorder %s310, %s311
    %p325 = scmp.eq.s32.totalorder %s25, 1
    %p326 = por %p324, %p325
    %p328 = scmp.ne.s32.totalorder %s311, %s327
    %p329 = scmp.eq.s32.totalorder %s25, 0
    %p330 = por %p328, %p329
    %p331 = scmp.le.s32.totalorder 1, %s19
    %p332 = scmp.lt.s32.totalorder %s19, 3
    %p333 = pnand %p331, %p332
    %p334 = pneg %p333
    // Predicated region
    $region9: #{tpu_custom_call.1} parent=5 // pred_check
      _
    $region10: #{tpu_custom_call.1} parent=5 // pred_check_branch
      %336 = sbr.rel (%p333) target = $region12
    $region11: #{tpu_custom_call.1} parent=5 // pred_region
      %s337 = ssub.s32 %s19, 1
      // Predicated region
      $region13: #{tpu_custom_call.1} parent=11 // pred_check
        %p338 = pneg %p66
      $region14: #{tpu_custom_call.1} parent=11 // pred_check_branch
        %340 = sbr.rel (%p338) target = $region16
      $region15: #{tpu_custom_call.1} parent=11 // pred_region
        _
      $region16: #{tpu_custom_call.1} parent=11 // pred_fallthru
        _
      // Predicated region
      $region17: #{tpu_custom_call.1} parent=11 // pred_check
        %p341 = pneg %p87
      $region18: #{tpu_custom_call.1} parent=11 // pred_check_branch
        %343 = sbr.rel (%p341) target = $region20
      $region19: #{tpu_custom_call.1} parent=11 // pred_region
        _
      $region20: #{tpu_custom_call.1} parent=11 // pred_fallthru
        _
      // Predicated region
      $region21: #{tpu_custom_call.1} parent=11 // pred_check
        %p344 = pneg %p108
      $region22: #{tpu_custom_call.1} parent=11 // pred_check_branch
        %346 = sbr.rel (%p344) target = $region24
      $region23: #{tpu_custom_call.1} parent=11 // pred_region
        _
      $region24: #{tpu_custom_call.1} parent=11 // pred_fallthru
        _
      // Predicated region
      $region25: #{tpu_custom_call.1} parent=11 // pred_check
        %p347 = pneg %p129
      $region26: #{tpu_custom_call.1} parent=11 // pred_check_branch
        %349 = sbr.rel (%p347) target = $region28
      $region27: #{tpu_custom_call.1} parent=11 // pred_region
        _
      $region28: #{tpu_custom_call.1} parent=11 // pred_fallthru
        _
      // Predicated region
      $region29: #{tpu_custom_call.1} parent=11 // pred_check
        %p350 = pneg %p150
      $region30: #{tpu_custom_call.1} parent=11 // pred_check_branch
        %352 = sbr.rel (%p350) target = $region32
      $region31: #{tpu_custom_call.1} parent=11 // pred_region
        _
      $region32: #{tpu_custom_call.1} parent=11 // pred_fallthru
        _
      // Predicated region
      $region33: #{tpu_custom_call.1} parent=11 // pred_check
        %p353 = pneg %p171
      $region34: #{tpu_custom_call.1} parent=11 // pred_check_branch
        %355 = sbr.rel (%p353) target = $region36
      $region35: #{tpu_custom_call.1} parent=11 // pred_region
        _
      $region36: #{tpu_custom_call.1} parent=11 // pred_fallthru
        _
      // Predicated region
      $region37: #{tpu_custom_call.1} parent=11 // pred_check
        %p356 = pneg %p192
      $region38: #{tpu_custom_call.1} parent=11 // pred_check_branch
        %358 = sbr.rel (%p356) target = $region40
      $region39: #{tpu_custom_call.1} parent=11 // pred_region
        _
      $region40: #{tpu_custom_call.1} parent=11 // pred_fallthru
        _
      // Predicated region
      $region41: #{tpu_custom_call.1} parent=11 // pred_check
        %p359 = pneg %p213
      $region42: #{tpu_custom_call.1} parent=11 // pred_check_branch
        %361 = sbr.rel (%p359) target = $region44
      $region43: #{tpu_custom_call.1} parent=11 // pred_region
        _
      $region44: #{tpu_custom_call.1} parent=11 // pred_fallthru
        _
      // Predicated region
      $region45: #{tpu_custom_call.1} parent=11 // pred_check
        %p362 = pneg %p234
      $region46: #{tpu_custom_call.1} parent=11 // pred_check_branch
        %364 = sbr.rel (%p362) target = $region48
      $region47: #{tpu_custom_call.1} parent=11 // pred_region
        _
      $region48: #{tpu_custom_call.1} parent=11 // pred_fallthru
        _
      // Predicated region
      $region49: #{tpu_custom_call.1} parent=11 // pred_check
        %p365 = pneg %p255
      $region50: #{tpu_custom_call.1} parent=11 // pred_check_branch
        %367 = sbr.rel (%p365) target = $region52
      $region51: #{tpu_custom_call.1} parent=11 // pred_region
        _
      $region52: #{tpu_custom_call.1} parent=11 // pred_fallthru
        _
      // Predicated region
      $region53: #{tpu_custom_call.1} parent=11 // pred_check
        %p368 = pneg %p276
      $region54: #{tpu_custom_call.1} parent=11 // pred_check_branch
        %370 = sbr.rel (%p368) target = $region56
      $region55: #{tpu_custom_call.1} parent=11 // pred_region
        _
      $region56: #{tpu_custom_call.1} parent=11 // pred_fallthru
        _
      // Predicated region
      $region57: #{tpu_custom_call.1} parent=11 // pred_check
        %p371 = pneg %p297
      $region58: #{tpu_custom_call.1} parent=11 // pred_check_branch
        %373 = sbr.rel (%p371) target = $region60
      $region59: #{tpu_custom_call.1} parent=11 // pred_region
        _
      $region60: #{tpu_custom_call.1} parent=11 // pred_fallthru
        _
    $region12: #{tpu_custom_call.1} parent=5 // pred_fallthru
      _
    %p374 = scmp.lt.s32.totalorder %s19, 2
    // Predicated region
    $region61: #{tpu_custom_call.1} parent=5 // pred_check
      %p375 = pneg %p374
    $region62: #{tpu_custom_call.1} parent=5 // pred_check_branch
      %377 = sbr.rel (%p375) target = $region64
    $region63: #{tpu_custom_call.1} parent=5 // pred_region
      // Predicated region
      $region65: #{tpu_custom_call.1} parent=63 // pred_check
        %p378 = pneg %p39
      $region66: #{tpu_custom_call.1} parent=63 // pred_check_branch
        %380 = sbr.rel (%p378) target = $region68
      $region67: #{tpu_custom_call.1} parent=63 // pred_region
        %s381 = smul.u32 8, %s19
        %p382 = scmp.lt.s32.totalorder %s381, 15
        %s383 = scalar_select %p382, %s381, 15
        %s384 = smul.addr %s383, 8
        %s385 = scalar_lea.vmem %s0, %s384
        %s386 = smul.u32 8, %s19
      $region68: #{tpu_custom_call.1} parent=63 // pred_fallthru
        _
    $region64: #{tpu_custom_call.1} parent=5 // pred_fallthru
      _
    %p387 = scmp.le.s32.totalorder 1, %s19
    %p388 = scmp.lt.s32.totalorder %s19, 3
    %p389 = pnand %p387, %p388
    %p390 = pneg %p389
    // Predicated region
    $region69: #{tpu_custom_call.1} parent=5 // pred_check
      _
    $region70: #{tpu_custom_call.1} parent=5 // pred_check_branch
      %392 = sbr.rel (%p389) target = $region72
    $region71: #{tpu_custom_call.1} parent=5 // pred_region
      %s393 = ssub.s32 %s19, 1
      %s394 = smul.u32 8, %s24
      %p395 = scmp.lt.s32.totalorder %s394, 15
      %s396 = scalar_select %p395, %s394, 15
      %s397 = smul.addr %s396, 8
      %s398 = scalar_lea.vmem %s0, %s397
      %p399 = pneg %p45
      %p400 = pneg %p42
      %p401 = pneg %p66
      %p402 = pneg %p63
      %p403 = pneg %p87
      %p404 = pneg %p84
      %p405 = pneg %p108
      %p406 = pneg %p105
      %p407 = pneg %p129
      %p408 = pneg %p126
      %p409 = pneg %p150
      %p410 = pneg %p147
      %p411 = pneg %p171
      %p412 = pneg %p168
      %p413 = pneg %p192
      %p414 = pneg %p189
      %p415 = pneg %p213
      %p416 = pneg %p210
      %p417 = pneg %p234
      %p418 = pneg %p231
      %p419 = pneg %p255
      %p420 = pneg %p252
      %p421 = pneg %p276
      %p422 = pneg %p273
      %p423 = pneg %p297
      %p424 = pneg %p294
      %p425 = pneg %p323
      %p426 = pneg %p320
      %s427 = smul.u32 8, %s24
      %p428 = scmp.lt.s32.totalorder %s427, 15
      %s429 = scalar_select %p428, %s427, 15
      %s430 = smul.addr %s429, 8
      %s431 = scalar_lea.vmem %s13, %s430
      %s432 = smul.u32 8, %s24
      %p433 = scmp.lt.s32.totalorder %s432, 15
      %s434 = scalar_select %p433, %s432, 15
      %s435 = smul.addr %s434, 8
      %s436 = scalar_lea.vmem %s0, %s435
      %s437 = smul.u32 8, %s24
      %s438 = smul.u32 8, %s24
      %p439 = scmp.lt.s32.totalorder %s438, 15
      %s440 = scalar_select %p439, %s438, 15
      %s441 = smul.addr %s440, 8
      %s442 = scalar_lea.vmem %s13, %s441
      %s443 = smul.u32 8, %s24
      %v444 = vld [vmem:[%s436] sm:$0xff]
      %v445 = vld [vmem:[%s436 + $0x8] sm:$0xff]
      %v446 = vld [vmem:[%s436 + $0x10] sm:$0xff]
      %v447 = vld [vmem:[%s436 + $0x18] sm:$0xff]
      %v448 = vld [vmem:[%s436 + $0x20] sm:$0xff]
      %v449 = vld [vmem:[%s436 + $0x28] sm:$0xff]
      %v450 = vld [vmem:[%s436 + $0x30] sm:$0xff]
      %v451 = vld [vmem:[%s436 + $0x38] sm:$0xff]
      %v452 = vld [vmem:[%s1] sm:$0xff]
      %v453 = vld [vmem:[%s1 + $0x8] sm:$0xff]
      %v454 = vld [vmem:[%s1 + $0x10] sm:$0xff]
      %v455 = vld [vmem:[%s1 + $0x18] sm:$0xff]
      %v456 = vld [vmem:[%s1 + $0x20] sm:$0xff]
      %v457 = vld [vmem:[%s1 + $0x28] sm:$0xff]
      %v458 = vld [vmem:[%s1 + $0x30] sm:$0xff]
      %v459 = vld [vmem:[%s1 + $0x38] sm:$0xff]
      %v460 = vld [vmem:[%s2] sm:$0x1]
      %v462 = vperm.slane %v460, 0
      %vm464 = vcmask 523264
      %v466 = vsel %vm464, %v444, 0
      %v469 = vsel %vm464, %v445, 0
      %v472 = vsel %vm464, %v446, 0
      %v475 = vsel %vm464, %v447, 0
      %v478 = vsel %vm464, %v448, 0
      %v481 = vsel %vm464, %v449, 0
      %v484 = vsel %vm464, %v450, 0
      %v487 = vsel %vm464, %v451, 0
      %489 = vmatpush.msra.mxu0 0.0
      %490 = vmatpush.msra.mxu0 0.0
      %491 = vmatpush.msra.mxu0 0.0
      %492 = vmatpush.msra.mxu0 0.0
      %493 = vmatpush.msra.mxu0 0.0
      %494 = vmatpush.msra.mxu0 0.0
      %495 = vmatpush.msra.mxu0 0.0
      %496 = vmatpush.msra.mxu0 0.0
      %497 = vmatpush.msra.mxu0 %v459
      %498 = vmatpush.msra.mxu0 %v458
      %499 = vmatpush.msra.mxu0 %v457
      %500 = vmatpush.msra.mxu0 %v456
      %501 = vmatpush.msra.mxu0 %v455
      %502 = vmatpush.msra.mxu0 %v454
      %503 = vmatpush.msra.mxu0 %v453
      %504 = vmatpush.msra.mxu0 %v452
      %505 = vmatmul.f32.gmra.mxu0 %v466
      %v506 = vpop.f32.mrf.mxu0
      %v507 = vadd.f32 %v462, %v506
      %508 = vmatmul.f32.gmra.mxu0 %v469
      %v509 = vpop.f32.mrf.mxu0
      %v510 = vadd.f32 %v462, %v509
      %511 = vmatmul.f32.gmra.mxu0 %v472
      %v512 = vpop.f32.mrf.mxu0
      %v513 = vadd.f32 %v462, %v512
      %514 = vmatmul.f32.gmra.mxu0 %v475
      %v515 = vpop.f32.mrf.mxu0
      %v516 = vadd.f32 %v462, %v515
      %517 = vmatmul.f32.gmra.mxu0 %v478
      %v518 = vpop.f32.mrf.mxu0
      %v519 = vadd.f32 %v462, %v518
      %520 = vmatmul.f32.gmra.mxu0 %v481
      %v521 = vpop.f32.mrf.mxu0
      %v522 = vadd.f32 %v462, %v521
      %523 = vmatmul.f32.gmra.mxu0 %v484
      %v524 = vpop.f32.mrf.mxu0
      %v525 = vadd.f32 %v462, %v524
      %526 = vmatmul.f32.gmra.mxu0 %v487
      %v527 = vpop.f32.mrf.mxu0
      %v528 = vadd.f32 %v462, %v527
      %529 = vdwg.mxu0
      %v530 = vmax.f32 %v507, 0.0
      %v531 = vmax.f32 %v510, 0.0
      %v532 = vmax.f32 %v513, 0.0
      %v533 = vmax.f32 %v516, 0.0
      %v534 = vmax.f32 %v519, 0.0
      %v535 = vmax.f32 %v522, 0.0
      %v536 = vmax.f32 %v525, 0.0
      %v537 = vmax.f32 %v528, 0.0
      %v538 = vld [vmem:[%s3] sm:$0xff]
      %v539 = vld [vmem:[%s3 + $0x8] sm:$0xff]
      %v540 = vld [vmem:[%s3 + $0x10] sm:$0xff]
      %v541 = vld [vmem:[%s3 + $0x18] sm:$0xff]
      %v542 = vld [vmem:[%s3 + $0x20] sm:$0xff]
      %v543 = vld [vmem:[%s3 + $0x28] sm:$0xff]
      %v544 = vld [vmem:[%s3 + $0x30] sm:$0xff]
      %v545 = vld [vmem:[%s3 + $0x38] sm:$0xff]
      %v546 = vld [vmem:[%s3 + $0x40] sm:$0xff]
      %v547 = vld [vmem:[%s3 + $0x48] sm:$0xff]
      %v548 = vld [vmem:[%s3 + $0x50] sm:$0xff]
      %v549 = vld [vmem:[%s3 + $0x58] sm:$0xff]
      %v550 = vld [vmem:[%s3 + $0x60] sm:$0xff]
      %v551 = vld [vmem:[%s3 + $0x68] sm:$0xff]
      %v552 = vld [vmem:[%s3 + $0x70] sm:$0xff]
      %v553 = vld [vmem:[%s3 + $0x78] sm:$0xff]
      %v554 = vld [vmem:[%s4] sm:$0x1]
      %v556 = vperm.slane %v554, 0
      %558 = vmatpush.msra.mxu0 %v553
      %559 = vmatpush.msra.mxu0 %v552
      %560 = vmatpush.msra.mxu0 %v551
      %561 = vmatpush.msra.mxu0 %v550
      %562 = vmatpush.msra.mxu0 %v549
      %563 = vmatpush.msra.mxu0 %v548
      %564 = vmatpush.msra.mxu0 %v547
      %565 = vmatpush.msra.mxu0 %v546
      %566 = vmatpush.msra.mxu0 %v545
      %567 = vmatpush.msra.mxu0 %v544
      %568 = vmatpush.msra.mxu0 %v543
      %569 = vmatpush.msra.mxu0 %v542
      %570 = vmatpush.msra.mxu0 %v541
      %571 = vmatpush.msra.mxu0 %v540
      %572 = vmatpush.msra.mxu0 %v539
      %573 = vmatpush.msra.mxu0 %v538
      %574 = vmatmul.f32.gmra.mxu0 %v530
      %v575 = vpop.f32.mrf.mxu0
      %v576 = vadd.f32 %v556, %v575
      %577 = vmatmul.f32.gmra.mxu0 %v531
      %v578 = vpop.f32.mrf.mxu0
      %v579 = vadd.f32 %v556, %v578
      %580 = vmatmul.f32.gmra.mxu0 %v532
      %v581 = vpop.f32.mrf.mxu0
      %v582 = vadd.f32 %v556, %v581
      %583 = vmatmul.f32.gmra.mxu0 %v533
      %v584 = vpop.f32.mrf.mxu0
      %v585 = vadd.f32 %v556, %v584
      %586 = vmatmul.f32.gmra.mxu0 %v534
      %v587 = vpop.f32.mrf.mxu0
      %v588 = vadd.f32 %v556, %v587
      %589 = vmatmul.f32.gmra.mxu0 %v535
      %v590 = vpop.f32.mrf.mxu0
      %v591 = vadd.f32 %v556, %v590
      %592 = vmatmul.f32.gmra.mxu0 %v536
      %v593 = vpop.f32.mrf.mxu0
      %v594 = vadd.f32 %v556, %v593
      %595 = vmatmul.f32.gmra.mxu0 %v537
      %v596 = vpop.f32.mrf.mxu0
      %v597 = vadd.f32 %v556, %v596
      %598 = vdwg.mxu0
      %v599 = vmax.f32 %v576, 0.0
      %v600 = vmax.f32 %v579, 0.0
      %v601 = vmax.f32 %v582, 0.0
      %v602 = vmax.f32 %v585, 0.0
      %v603 = vmax.f32 %v588, 0.0
      %v604 = vmax.f32 %v591, 0.0
      %v605 = vmax.f32 %v594, 0.0
      %v606 = vmax.f32 %v597, 0.0
      %v607 = vld [vmem:[%s5] sm:$0xff]
      %v608 = vld [vmem:[%s5 + $0x8] sm:$0xff]
      %v609 = vld [vmem:[%s5 + $0x10] sm:$0xff]
      %v610 = vld [vmem:[%s5 + $0x18] sm:$0xff]
      %v611 = vld [vmem:[%s5 + $0x20] sm:$0xff]
      %v612 = vld [vmem:[%s5 + $0x28] sm:$0xff]
      %v613 = vld [vmem:[%s5 + $0x30] sm:$0xff]
      %v614 = vld [vmem:[%s5 + $0x38] sm:$0xff]
      %v615 = vld [vmem:[%s6] sm:$0x1]
      %v617 = vperm.slane %v615, 0
      %v620 = vsel %vm464, %v599, 0
      %v623 = vsel %vm464, %v600, 0
      %v626 = vsel %vm464, %v601, 0
      %v629 = vsel %vm464, %v602, 0
      %v632 = vsel %vm464, %v603, 0
      %v635 = vsel %vm464, %v604, 0
      %v638 = vsel %vm464, %v605, 0
      %v641 = vsel %vm464, %v606, 0
      %643 = vmatpush.msra.mxu0 0.0
      %644 = vmatpush.msra.mxu0 0.0
      %645 = vmatpush.msra.mxu0 0.0
      %646 = vmatpush.msra.mxu0 0.0
      %647 = vmatpush.msra.mxu0 0.0
      %648 = vmatpush.msra.mxu0 0.0
      %649 = vmatpush.msra.mxu0 0.0
      %650 = vmatpush.msra.mxu0 0.0
      %651 = vmatpush.msra.mxu0 %v614
      %652 = vmatpush.msra.mxu0 %v613
      %653 = vmatpush.msra.mxu0 %v612
      %654 = vmatpush.msra.mxu0 %v611
      %655 = vmatpush.msra.mxu0 %v610
      %656 = vmatpush.msra.mxu0 %v609
      %657 = vmatpush.msra.mxu0 %v608
      %658 = vmatpush.msra.mxu0 %v607
      %659 = vmatmul.f32.gmra.mxu0 %v620
      %v660 = vpop.f32.mrf.mxu0
      %v661 = vadd.f32 %v617, %v660
      %662 = vmatmul.f32.gmra.mxu0 %v623
      %v663 = vpop.f32.mrf.mxu0
      %v664 = vadd.f32 %v617, %v663
      %665 = vmatmul.f32.gmra.mxu0 %v626
      %v666 = vpop.f32.mrf.mxu0
      %v667 = vadd.f32 %v617, %v666
      %668 = vmatmul.f32.gmra.mxu0 %v629
      %v669 = vpop.f32.mrf.mxu0
      %v670 = vadd.f32 %v617, %v669
      %671 = vmatmul.f32.gmra.mxu0 %v632
      %v672 = vpop.f32.mrf.mxu0
      %v673 = vadd.f32 %v617, %v672
      %674 = vmatmul.f32.gmra.mxu0 %v635
      %v675 = vpop.f32.mrf.mxu0
      %v676 = vadd.f32 %v617, %v675
      %677 = vmatmul.f32.gmra.mxu0 %v638
      %v678 = vpop.f32.mrf.mxu0
      %v679 = vadd.f32 %v617, %v678
      %680 = vmatmul.f32.gmra.mxu0 %v641
      %v681 = vpop.f32.mrf.mxu0
      %v682 = vadd.f32 %v617, %v681
      %683 = vdwg.mxu0
      %v684 = vmax.f32 %v661, 0.0
      %v685 = vmax.f32 %v664, 0.0
      %v686 = vmax.f32 %v667, 0.0
      %v687 = vmax.f32 %v670, 0.0
      %v688 = vmax.f32 %v673, 0.0
      %v689 = vmax.f32 %v676, 0.0
      %v690 = vmax.f32 %v679, 0.0
      %v691 = vmax.f32 %v682, 0.0
      %v692 = vld [vmem:[%s7] sm:$0xff]
      %v693 = vld [vmem:[%s7 + $0x8] sm:$0xff]
      %v694 = vld [vmem:[%s7 + $0x10] sm:$0xff]
      %v695 = vld [vmem:[%s7 + $0x18] sm:$0xff]
      %v696 = vld [vmem:[%s8] sm:$0x1]
      %v698 = vperm.slane %v696, 0
      %vm700 = vcmask 261120
      %v702 = vsel %vm700, %v684, 0
      %v705 = vsel %vm700, %v685, 0
      %v708 = vsel %vm700, %v686, 0
      %v711 = vsel %vm700, %v687, 0
      %v714 = vsel %vm700, %v688, 0
      %v717 = vsel %vm700, %v689, 0
      %v720 = vsel %vm700, %v690, 0
      %v723 = vsel %vm700, %v691, 0
      %725 = vmatpush.msra.mxu0 0.0
      %726 = vmatpush.msra.mxu0 0.0
      %727 = vmatpush.msra.mxu0 0.0
      %728 = vmatpush.msra.mxu0 0.0
      %729 = vmatpush.msra.mxu0 0.0
      %730 = vmatpush.msra.mxu0 0.0
      %731 = vmatpush.msra.mxu0 0.0
      %732 = vmatpush.msra.mxu0 0.0
      %733 = vmatpush.msra.mxu0 0.0
      %734 = vmatpush.msra.mxu0 0.0
      %735 = vmatpush.msra.mxu0 0.0
      %736 = vmatpush.msra.mxu0 0.0
      %737 = vmatpush.msra.mxu0 %v695
      %738 = vmatpush.msra.mxu0 %v694
      %739 = vmatpush.msra.mxu0 %v693
      %740 = vmatpush.msra.mxu0 %v692
      %741 = vmatmul.f32.gmra.mxu0 %v702
      %v742 = vpop.f32.mrf.mxu0
      %v743 = vadd.f32 %v698, %v742
      %744 = vmatmul.f32.gmra.mxu0 %v705
      %v745 = vpop.f32.mrf.mxu0
      %v746 = vadd.f32 %v698, %v745
      %747 = vmatmul.f32.gmra.mxu0 %v708
      %v748 = vpop.f32.mrf.mxu0
      %v749 = vadd.f32 %v698, %v748
      %750 = vmatmul.f32.gmra.mxu0 %v711
      %v751 = vpop.f32.mrf.mxu0
      %v752 = vadd.f32 %v698, %v751
      %753 = vmatmul.f32.gmra.mxu0 %v714
      %v754 = vpop.f32.mrf.mxu0
      %v755 = vadd.f32 %v698, %v754
      %756 = vmatmul.f32.gmra.mxu0 %v717
      %v757 = vpop.f32.mrf.mxu0
      %v758 = vadd.f32 %v698, %v757
      %759 = vmatmul.f32.gmra.mxu0 %v720
      %v760 = vpop.f32.mrf.mxu0
      %v761 = vadd.f32 %v698, %v760
      %762 = vmatmul.f32.gmra.mxu0 %v723
      %v763 = vpop.f32.mrf.mxu0
      %v764 = vadd.f32 %v698, %v763
      %765 = vdwg.mxu0
      %v766 = vmax.f32 %v743, 0.0
      %v767 = vmax.f32 %v746, 0.0
      %v768 = vmax.f32 %v749, 0.0
      %v769 = vmax.f32 %v752, 0.0
      %v770 = vmax.f32 %v755, 0.0
      %v771 = vmax.f32 %v758, 0.0
      %v772 = vmax.f32 %v761, 0.0
      %v773 = vmax.f32 %v764, 0.0
      %v774 = vld [vmem:[%s9] sm:$0xff]
      %v775 = vld [vmem:[%s9 + $0x8] sm:$0xff]
      %v776 = vld [vmem:[%s9 + $0x10] sm:$0xff]
      %v777 = vld [vmem:[%s9 + $0x18] sm:$0xff]
      %v778 = vld [vmem:[%s9 + $0x20] sm:$0xff]
      %v779 = vld [vmem:[%s9 + $0x28] sm:$0xff]
      %v780 = vld [vmem:[%s9 + $0x30] sm:$0xff]
      %v781 = vld [vmem:[%s9 + $0x38] sm:$0xff]
      %v782 = vld [vmem:[%s10] sm:$0x1]
      %v784 = vperm.slane %v782, 0
      %v787 = vsel %vm464, %v766, 0
      %v790 = vsel %vm464, %v767, 0
      %v793 = vsel %vm464, %v768, 0
      %v796 = vsel %vm464, %v769, 0
      %v799 = vsel %vm464, %v770, 0
      %v802 = vsel %vm464, %v771, 0
      %v805 = vsel %vm464, %v772, 0
      %v808 = vsel %vm464, %v773, 0
      %810 = vmatpush.msra.mxu0 0.0
      %811 = vmatpush.msra.mxu0 0.0
      %812 = vmatpush.msra.mxu0 0.0
      %813 = vmatpush.msra.mxu0 0.0
      %814 = vmatpush.msra.mxu0 0.0
      %815 = vmatpush.msra.mxu0 0.0
      %816 = vmatpush.msra.mxu0 0.0
      %817 = vmatpush.msra.mxu0 0.0
      %818 = vmatpush.msra.mxu0 %v781
      %819 = vmatpush.msra.mxu0 %v780
      %820 = vmatpush.msra.mxu0 %v779
      %821 = vmatpush.msra.mxu0 %v778
      %822 = vmatpush.msra.mxu0 %v777
      %823 = vmatpush.msra.mxu0 %v776
      %824 = vmatpush.msra.mxu0 %v775
      %825 = vmatpush.msra.mxu0 %v774
      %826 = vmatmul.f32.gmra.mxu0 %v787
      %v827 = vpop.f32.mrf.mxu0
      %v828 = vadd.f32 %v784, %v827
      %829 = vmatmul.f32.gmra.mxu0 %v790
      %v830 = vpop.f32.mrf.mxu0
      %v831 = vadd.f32 %v784, %v830
      %832 = vmatmul.f32.gmra.mxu0 %v793
      %v833 = vpop.f32.mrf.mxu0
      %v834 = vadd.f32 %v784, %v833
      %835 = vmatmul.f32.gmra.mxu0 %v796
      %v836 = vpop.f32.mrf.mxu0
      %v837 = vadd.f32 %v784, %v836
      %838 = vmatmul.f32.gmra.mxu0 %v799
      %v839 = vpop.f32.mrf.mxu0
      %v840 = vadd.f32 %v784, %v839
      %841 = vmatmul.f32.gmra.mxu0 %v802
      %v842 = vpop.f32.mrf.mxu0
      %v843 = vadd.f32 %v784, %v842
      %844 = vmatmul.f32.gmra.mxu0 %v805
      %v845 = vpop.f32.mrf.mxu0
      %v846 = vadd.f32 %v784, %v845
      %847 = vmatmul.f32.gmra.mxu0 %v808
      %v848 = vpop.f32.mrf.mxu0
      %v849 = vadd.f32 %v784, %v848
      %850 = vdwg.mxu0
      %v851 = vmax.f32 %v828, 0.0
      %v852 = vmax.f32 %v831, 0.0
      %v853 = vmax.f32 %v834, 0.0
      %v854 = vmax.f32 %v837, 0.0
      %v855 = vmax.f32 %v840, 0.0
      %v856 = vmax.f32 %v843, 0.0
      %v857 = vmax.f32 %v846, 0.0
      %v858 = vmax.f32 %v849, 0.0
      %v859 = vld [vmem:[%s11] sm:$0xff]
      %v860 = vld [vmem:[%s11 + $0x8] sm:$0xff]
      %v861 = vld [vmem:[%s11 + $0x10] sm:$0xff]
      %v862 = vld [vmem:[%s11 + $0x18] sm:$0xff]
      %v863 = vld [vmem:[%s11 + $0x20] sm:$0xff]
      %v864 = vld [vmem:[%s11 + $0x28] sm:$0xff]
      %v865 = vld [vmem:[%s11 + $0x30] sm:$0xff]
      %v866 = vld [vmem:[%s11 + $0x38] sm:$0xff]
      %v867 = vld [vmem:[%s11 + $0x40] sm:$0xff]
      %v868 = vld [vmem:[%s11 + $0x48] sm:$0xff]
      %v869 = vld [vmem:[%s11 + $0x50] sm:$0xff]
      %v870 = vld [vmem:[%s11 + $0x58] sm:$0xff]
      %v871 = vld [vmem:[%s11 + $0x60] sm:$0xff]
      %v872 = vld [vmem:[%s11 + $0x68] sm:$0xff]
      %v873 = vld [vmem:[%s11 + $0x70] sm:$0xff]
      %v874 = vld [vmem:[%s11 + $0x78] sm:$0xff]
      %v875 = vld [vmem:[%s12] sm:$0x1]
      %v877 = vperm.slane %v875, 0
      %879 = vmatpush.msra.mxu0 %v874
      %880 = vmatpush.msra.mxu0 %v873
      %881 = vmatpush.msra.mxu0 %v872
      %882 = vmatpush.msra.mxu0 %v871
      %883 = vmatpush.msra.mxu0 %v870
      %884 = vmatpush.msra.mxu0 %v869
      %885 = vmatpush.msra.mxu0 %v868
      %886 = vmatpush.msra.mxu0 %v867
      %887 = vmatpush.msra.mxu0 %v866
      %888 = vmatpush.msra.mxu0 %v865
      %889 = vmatpush.msra.mxu0 %v864
      %890 = vmatpush.msra.mxu0 %v863
      %891 = vmatpush.msra.mxu0 %v862
      %892 = vmatpush.msra.mxu0 %v861
      %893 = vmatpush.msra.mxu0 %v860
      %894 = vmatpush.msra.mxu0 %v859
      %895 = vmatmul.f32.gmra.mxu0 %v851
      %v896 = vpop.f32.mrf.mxu0
      %v897 = vadd.f32 %v877, %v896
      %898 = vmatmul.f32.gmra.mxu0 %v852
      %v899 = vpop.f32.mrf.mxu0
      %v900 = vadd.f32 %v877, %v899
      %901 = vmatmul.f32.gmra.mxu0 %v853
      %v902 = vpop.f32.mrf.mxu0
      %v903 = vadd.f32 %v877, %v902
      %904 = vmatmul.f32.gmra.mxu0 %v854
      %v905 = vpop.f32.mrf.mxu0
      %v906 = vadd.f32 %v877, %v905
      %907 = vmatmul.f32.gmra.mxu0 %v855
      %v908 = vpop.f32.mrf.mxu0
      %v909 = vadd.f32 %v877, %v908
      %910 = vmatmul.f32.gmra.mxu0 %v856
      %v911 = vpop.f32.mrf.mxu0
      %v912 = vadd.f32 %v877, %v911
      %913 = vmatmul.f32.gmra.mxu0 %v857
      %v914 = vpop.f32.mrf.mxu0
      %v915 = vadd.f32 %v877, %v914
      %916 = vmatmul.f32.gmra.mxu0 %v858
      %v917 = vpop.f32.mrf.mxu0
      %v918 = vadd.f32 %v877, %v917
      %919 = vdwg.mxu0
      %vm920 = vcmask 130048
      %v921 = vsel %vm920, %v897, -inf
      %922 = vmax.xlane.f32.xlu0 %v921
      %v923 = vpop.xlane.xlu0 %922
      %v924 = vsel %vm920, %v900, -inf
      %925 = vmax.xlane.f32.xlu0 %v924
      %v926 = vpop.xlane.xlu0 %925
      %v927 = vsel %vm920, %v903, -inf
      %928 = vmax.xlane.f32.xlu0 %v927
      %v929 = vpop.xlane.xlu0 %928
      %v930 = vsel %vm920, %v906, -inf
      %931 = vmax.xlane.f32.xlu0 %v930
      %v932 = vpop.xlane.xlu0 %931
      %v933 = vsel %vm920, %v909, -inf
      %934 = vmax.xlane.f32.xlu0 %v933
      %v935 = vpop.xlane.xlu0 %934
      %v936 = vsel %vm920, %v912, -inf
      %937 = vmax.xlane.f32.xlu0 %v936
      %v938 = vpop.xlane.xlu0 %937
      %v939 = vsel %vm920, %v915, -inf
      %940 = vmax.xlane.f32.xlu0 %v939
      %v941 = vpop.xlane.xlu0 %940
      %v942 = vsel %vm920, %v918, -inf
      %943 = vmax.xlane.f32.xlu0 %v942
      %v944 = vpop.xlane.xlu0 %943
      %v945 = vsub.f32 %v897, %v923
      %v946 = vsub.f32 %v900, %v926
      %v947 = vsub.f32 %v903, %v929
      %v948 = vsub.f32 %v906, %v932
      %v949 = vsub.f32 %v909, %v935
      %v950 = vsub.f32 %v912, %v938
      %v951 = vsub.f32 %v915, %v941
      %v952 = vsub.f32 %v918, %v944
      %v953 = vmul.f32 %v945, 1.442695
      %v954 = vpow.pop %v953
      %v955 = vmul.f32 %v946, 1.442695
      %v956 = vpow.pop %v955
      %v957 = vmul.f32 %v947, 1.442695
      %v958 = vpow.pop %v957
      %v959 = vmul.f32 %v948, 1.442695
      %v960 = vpow.pop %v959
      %v961 = vmul.f32 %v949, 1.442695
      %v962 = vpow.pop %v961
      %v963 = vmul.f32 %v950, 1.442695
      %v964 = vpow.pop %v963
      %v965 = vmul.f32 %v951, 1.442695
      %v966 = vpow.pop %v965
      %v967 = vmul.f32 %v952, 1.442695
      %v968 = vpow.pop %v967
      %v969 = vsel %vm920, %v954, 0.0
      %970 = vadd.xlane.f32.xlu0 %v969
      %v971 = vpop.xlane.xlu0 %970
      %v972 = vsel %vm920, %v956, 0.0
      %973 = vadd.xlane.f32.xlu0 %v972
      %v974 = vpop.xlane.xlu0 %973
      %v975 = vsel %vm920, %v958, 0.0
      %976 = vadd.xlane.f32.xlu0 %v975
      %v977 = vpop.xlane.xlu0 %976
      %v978 = vsel %vm920, %v960, 0.0
      %979 = vadd.xlane.f32.xlu0 %v978
      %v980 = vpop.xlane.xlu0 %979
      %v981 = vsel %vm920, %v962, 0.0
      %982 = vadd.xlane.f32.xlu0 %v981
      %v983 = vpop.xlane.xlu0 %982
      %v984 = vsel %vm920, %v964, 0.0
      %985 = vadd.xlane.f32.xlu0 %v984
      %v986 = vpop.xlane.xlu0 %985
      %v987 = vsel %vm920, %v966, 0.0
      %988 = vadd.xlane.f32.xlu0 %v987
      %v989 = vpop.xlane.xlu0 %988
      %v990 = vsel %vm920, %v968, 0.0
      %991 = vadd.xlane.f32.xlu0 %v990
      %v992 = vpop.xlane.xlu0 %991
      %v993 = vrcp.pop %v971
      %v994 = vmul.f32 %v971, %v993
      %v995 = vsub.f32 1.0, %v994
      %v996 = vmul.f32 %v993, %v995
      %v997 = vadd.f32 %v993, %v996
      %vm998 = vweird.f32 %v971
      %vm999 = vweird.f32 %v993
      %vm1000 = vmor %vm998, %vm999
      %v1001 = vsel %vm1000, %v993, %v997
      %v1002 = vand.u32 2147483647, %v971
      %vm1003 = vcmp.eq.f32.partialorder %v1002, 8.507059e+37
      %v1004 = vand.u32 %v971, 2147483648
      %v1005 = vor.u32 1.1754944e-38, %v1004
      %v1006 = vsel %vm1003, %v1005, %v1001
      %v1007 = vmul.f32 %v954, %v1006
      %v1008 = vrcp.pop %v974
      %v1009 = vmul.f32 %v974, %v1008
      %v1010 = vsub.f32 1.0, %v1009
      %v1011 = vmul.f32 %v1008, %v1010
      %v1012 = vadd.f32 %v1008, %v1011
      %vm1013 = vweird.f32 %v974
      %vm1014 = vweird.f32 %v1008
      %vm1015 = vmor %vm1013, %vm1014
      %v1016 = vsel %vm1015, %v1008, %v1012
      %v1017 = vand.u32 2147483647, %v974
      %vm1018 = vcmp.eq.f32.partialorder %v1017, 8.507059e+37
      %v1019 = vand.u32 %v974, 2147483648
      %v1020 = vor.u32 1.1754944e-38, %v1019
      %v1021 = vsel %vm1018, %v1020, %v1016
      %v1022 = vmul.f32 %v956, %v1021
      %v1023 = vrcp.pop %v977
      %v1024 = vmul.f32 %v977, %v1023
      %v1025 = vsub.f32 1.0, %v1024
      %v1026 = vmul.f32 %v1023, %v1025
      %v1027 = vadd.f32 %v1023, %v1026
      %vm1028 = vweird.f32 %v977
      %vm1029 = vweird.f32 %v1023
      %vm1030 = vmor %vm1028, %vm1029
      %v1031 = vsel %vm1030, %v1023, %v1027
      %v1032 = vand.u32 2147483647, %v977
      %vm1033 = vcmp.eq.f32.partialorder %v1032, 8.507059e+37
      %v1034 = vand.u32 %v977, 2147483648
      %v1035 = vor.u32 1.1754944e-38, %v1034
      %v1036 = vsel %vm1033, %v1035, %v1031
      %v1037 = vmul.f32 %v958, %v1036
      %v1038 = vrcp.pop %v980
      %v1039 = vmul.f32 %v980, %v1038
      %v1040 = vsub.f32 1.0, %v1039
      %v1041 = vmul.f32 %v1038, %v1040
      %v1042 = vadd.f32 %v1038, %v1041
      %vm1043 = vweird.f32 %v980
      %vm1044 = vweird.f32 %v1038
      %vm1045 = vmor %vm1043, %vm1044
      %v1046 = vsel %vm1045, %v1038, %v1042
      %v1047 = vand.u32 2147483647, %v980
      %vm1048 = vcmp.eq.f32.partialorder %v1047, 8.507059e+37
      %v1049 = vand.u32 %v980, 2147483648
      %v1050 = vor.u32 1.1754944e-38, %v1049
      %v1051 = vsel %vm1048, %v1050, %v1046
      %v1052 = vmul.f32 %v960, %v1051
      %v1053 = vrcp.pop %v983
      %v1054 = vmul.f32 %v983, %v1053
      %v1055 = vsub.f32 1.0, %v1054
      %v1056 = vmul.f32 %v1053, %v1055
      %v1057 = vadd.f32 %v1053, %v1056
      %vm1058 = vweird.f32 %v983
      %vm1059 = vweird.f32 %v1053
      %vm1060 = vmor %vm1058, %vm1059
      %v1061 = vsel %vm1060, %v1053, %v1057
      %v1062 = vand.u32 2147483647, %v983
      %vm1063 = vcmp.eq.f32.partialorder %v1062, 8.507059e+37
      %v1064 = vand.u32 %v983, 2147483648
      %v1065 = vor.u32 1.1754944e-38, %v1064
      %v1066 = vsel %vm1063, %v1065, %v1061
      %v1067 = vmul.f32 %v962, %v1066
      %v1068 = vrcp.pop %v986
      %v1069 = vmul.f32 %v986, %v1068
      %v1070 = vsub.f32 1.0, %v1069
      %v1071 = vmul.f32 %v1068, %v1070
      %v1072 = vadd.f32 %v1068, %v1071
      %vm1073 = vweird.f32 %v986
      %vm1074 = vweird.f32 %v1068
      %vm1075 = vmor %vm1073, %vm1074
      %v1076 = vsel %vm1075, %v1068, %v1072
      %v1077 = vand.u32 2147483647, %v986
      %vm1078 = vcmp.eq.f32.partialorder %v1077, 8.507059e+37
      %v1079 = vand.u32 %v986, 2147483648
      %v1080 = vor.u32 1.1754944e-38, %v1079
      %v1081 = vsel %vm1078, %v1080, %v1076
      %v1082 = vmul.f32 %v964, %v1081
      %v1083 = vrcp.pop %v989
      %v1084 = vmul.f32 %v989, %v1083
      %v1085 = vsub.f32 1.0, %v1084
      %v1086 = vmul.f32 %v1083, %v1085
      %v1087 = vadd.f32 %v1083, %v1086
      %vm1088 = vweird.f32 %v989
      %vm1089 = vweird.f32 %v1083
      %vm1090 = vmor %vm1088, %vm1089
      %v1091 = vsel %vm1090, %v1083, %v1087
      %v1092 = vand.u32 2147483647, %v989
      %vm1093 = vcmp.eq.f32.partialorder %v1092, 8.507059e+37
      %v1094 = vand.u32 %v989, 2147483648
      %v1095 = vor.u32 1.1754944e-38, %v1094
      %v1096 = vsel %vm1093, %v1095, %v1091
      %v1097 = vmul.f32 %v966, %v1096
      %v1098 = vrcp.pop %v992
      %v1099 = vmul.f32 %v992, %v1098
      %v1100 = vsub.f32 1.0, %v1099
      %v1101 = vmul.f32 %v1098, %v1100
      %v1102 = vadd.f32 %v1098, %v1101
      %vm1103 = vweird.f32 %v992
      %vm1104 = vweird.f32 %v1098
      %vm1105 = vmor %vm1103, %vm1104
      %v1106 = vsel %vm1105, %v1098, %v1102
      %v1107 = vand.u32 2147483647, %v992
      %vm1108 = vcmp.eq.f32.partialorder %v1107, 8.507059e+37
      %v1109 = vand.u32 %v992, 2147483648
      %v1110 = vor.u32 1.1754944e-38, %v1109
      %v1111 = vsel %vm1108, %v1110, %v1106
      %v1112 = vmul.f32 %v968, %v1111
      %vm1113 = vcmask 261248
      %v1114 = vsel %vm1113, %v897, -inf
      %1115 = vmax.xlane.f32.xlu0 %v1114
      %v1116 = vpop.xlane.xlu0 %1115
      %v1117 = vsel %vm1113, %v900, -inf
      %1118 = vmax.xlane.f32.xlu0 %v1117
      %v1119 = vpop.xlane.xlu0 %1118
      %v1120 = vsel %vm1113, %v903, -inf
      %1121 = vmax.xlane.f32.xlu0 %v1120
      %v1122 = vpop.xlane.xlu0 %1121
      %v1123 = vsel %vm1113, %v906, -inf
      %1124 = vmax.xlane.f32.xlu0 %v1123
      %v1125 = vpop.xlane.xlu0 %1124
      %v1126 = vsel %vm1113, %v909, -inf
      %1127 = vmax.xlane.f32.xlu0 %v1126
      %v1128 = vpop.xlane.xlu0 %1127
      %v1129 = vsel %vm1113, %v912, -inf
      %1130 = vmax.xlane.f32.xlu0 %v1129
      %v1131 = vpop.xlane.xlu0 %1130
      %v1132 = vsel %vm1113, %v915, -inf
      %1133 = vmax.xlane.f32.xlu0 %v1132
      %v1134 = vpop.xlane.xlu0 %1133
      %v1135 = vsel %vm1113, %v918, -inf
      %1136 = vmax.xlane.f32.xlu0 %v1135
      %v1137 = vpop.xlane.xlu0 %1136
      %v1138 = vsub.f32 %v897, %v1116
      %v1139 = vsub.f32 %v900, %v1119
      %v1140 = vsub.f32 %v903, %v1122
      %v1141 = vsub.f32 %v906, %v1125
      %v1142 = vsub.f32 %v909, %v1128
      %v1143 = vsub.f32 %v912, %v1131
      %v1144 = vsub.f32 %v915, %v1134
      %v1145 = vsub.f32 %v918, %v1137
      %v1146 = vmul.f32 %v1138, 1.442695
      %v1147 = vpow.pop %v1146
      %v1148 = vmul.f32 %v1139, 1.442695
      %v1149 = vpow.pop %v1148
      %v1150 = vmul.f32 %v1140, 1.442695
      %v1151 = vpow.pop %v1150
      %v1152 = vmul.f32 %v1141, 1.442695
      %v1153 = vpow.pop %v1152
      %v1154 = vmul.f32 %v1142, 1.442695
      %v1155 = vpow.pop %v1154
      %v1156 = vmul.f32 %v1143, 1.442695
      %v1157 = vpow.pop %v1156
      %v1158 = vmul.f32 %v1144, 1.442695
      %v1159 = vpow.pop %v1158
      %v1160 = vmul.f32 %v1145, 1.442695
      %v1161 = vpow.pop %v1160
      %1170 = vrot.lane.b32.xlu0 %v1147, 112
      %v1171 = vpop.permute.xlu0 %1170
      %1172 = vrot.lane.b32.xlu0 %v1149, 112
      %v1173 = vpop.permute.xlu0 %1172
      %1174 = vrot.lane.b32.xlu0 %v1151, 112
      %v1175 = vpop.permute.xlu0 %1174
      %1176 = vrot.lane.b32.xlu0 %v1153, 112
      %v1177 = vpop.permute.xlu0 %1176
      %1178 = vrot.lane.b32.xlu0 %v1155, 112
      %v1179 = vpop.permute.xlu0 %1178
      %1180 = vrot.lane.b32.xlu0 %v1157, 112
      %v1181 = vpop.permute.xlu0 %1180
      %1182 = vrot.lane.b32.xlu0 %v1159, 112
      %v1183 = vpop.permute.xlu0 %1182
      %1184 = vrot.lane.b32.xlu0 %v1161, 112
      %v1185 = vpop.permute.xlu0 %1184
      %v1194 = vsel %vm920, %v1171, 0.0
      %1195 = vadd.xlane.f32.xlu0 %v1194
      %v1196 = vpop.xlane.xlu0 %1195
      %v1197 = vsel %vm920, %v1173, 0.0
      %1198 = vadd.xlane.f32.xlu0 %v1197
      %v1199 = vpop.xlane.xlu0 %1198
      %v1200 = vsel %vm920, %v1175, 0.0
      %1201 = vadd.xlane.f32.xlu0 %v1200
      %v1202 = vpop.xlane.xlu0 %1201
      %v1203 = vsel %vm920, %v1177, 0.0
      %1204 = vadd.xlane.f32.xlu0 %v1203
      %v1205 = vpop.xlane.xlu0 %1204
      %v1206 = vsel %vm920, %v1179, 0.0
      %1207 = vadd.xlane.f32.xlu0 %v1206
      %v1208 = vpop.xlane.xlu0 %1207
      %v1209 = vsel %vm920, %v1181, 0.0
      %1210 = vadd.xlane.f32.xlu0 %v1209
      %v1211 = vpop.xlane.xlu0 %1210
      %v1212 = vsel %vm920, %v1183, 0.0
      %1213 = vadd.xlane.f32.xlu0 %v1212
      %v1214 = vpop.xlane.xlu0 %1213
      %v1215 = vsel %vm920, %v1185, 0.0
      %1216 = vadd.xlane.f32.xlu0 %v1215
      %v1217 = vpop.xlane.xlu0 %1216
      %v1218 = vrcp.pop %v1196
      %v1219 = vmul.f32 %v1196, %v1218
      %v1220 = vsub.f32 1.0, %v1219
      %v1221 = vmul.f32 %v1218, %v1220
      %v1222 = vadd.f32 %v1218, %v1221
      %vm1223 = vweird.f32 %v1196
      %vm1224 = vweird.f32 %v1218
      %vm1225 = vmor %vm1223, %vm1224
      %v1226 = vsel %vm1225, %v1218, %v1222
      %v1227 = vand.u32 2147483647, %v1196
      %vm1228 = vcmp.eq.f32.partialorder %v1227, 8.507059e+37
      %v1229 = vand.u32 %v1196, 2147483648
      %v1230 = vor.u32 1.1754944e-38, %v1229
      %v1231 = vsel %vm1228, %v1230, %v1226
      %v1232 = vmul.f32 %v1147, %v1231
      %v1233 = vrcp.pop %v1199
      %v1234 = vmul.f32 %v1199, %v1233
      %v1235 = vsub.f32 1.0, %v1234
      %v1236 = vmul.f32 %v1233, %v1235
      %v1237 = vadd.f32 %v1233, %v1236
      %vm1238 = vweird.f32 %v1199
      %vm1239 = vweird.f32 %v1233
      %vm1240 = vmor %vm1238, %vm1239
      %v1241 = vsel %vm1240, %v1233, %v1237
      %v1242 = vand.u32 2147483647, %v1199
      %vm1243 = vcmp.eq.f32.partialorder %v1242, 8.507059e+37
      %v1244 = vand.u32 %v1199, 2147483648
      %v1245 = vor.u32 1.1754944e-38, %v1244
      %v1246 = vsel %vm1243, %v1245, %v1241
      %v1247 = vmul.f32 %v1149, %v1246
      %v1248 = vrcp.pop %v1202
      %v1249 = vmul.f32 %v1202, %v1248
      %v1250 = vsub.f32 1.0, %v1249
      %v1251 = vmul.f32 %v1248, %v1250
      %v1252 = vadd.f32 %v1248, %v1251
      %vm1253 = vweird.f32 %v1202
      %vm1254 = vweird.f32 %v1248
      %vm1255 = vmor %vm1253, %vm1254
      %v1256 = vsel %vm1255, %v1248, %v1252
      %v1257 = vand.u32 2147483647, %v1202
      %vm1258 = vcmp.eq.f32.partialorder %v1257, 8.507059e+37
      %v1259 = vand.u32 %v1202, 2147483648
      %v1260 = vor.u32 1.1754944e-38, %v1259
      %v1261 = vsel %vm1258, %v1260, %v1256
      %v1262 = vmul.f32 %v1151, %v1261
      %v1263 = vrcp.pop %v1205
      %v1264 = vmul.f32 %v1205, %v1263
      %v1265 = vsub.f32 1.0, %v1264
      %v1266 = vmul.f32 %v1263, %v1265
      %v1267 = vadd.f32 %v1263, %v1266
      %vm1268 = vweird.f32 %v1205
      %vm1269 = vweird.f32 %v1263
      %vm1270 = vmor %vm1268, %vm1269
      %v1271 = vsel %vm1270, %v1263, %v1267
      %v1272 = vand.u32 2147483647, %v1205
      %vm1273 = vcmp.eq.f32.partialorder %v1272, 8.507059e+37
      %v1274 = vand.u32 %v1205, 2147483648
      %v1275 = vor.u32 1.1754944e-38, %v1274
      %v1276 = vsel %vm1273, %v1275, %v1271
      %v1277 = vmul.f32 %v1153, %v1276
      %v1278 = vrcp.pop %v1208
      %v1279 = vmul.f32 %v1208, %v1278
      %v1280 = vsub.f32 1.0, %v1279
      %v1281 = vmul.f32 %v1278, %v1280
      %v1282 = vadd.f32 %v1278, %v1281
      %vm1283 = vweird.f32 %v1208
      %vm1284 = vweird.f32 %v1278
      %vm1285 = vmor %vm1283, %vm1284
      %v1286 = vsel %vm1285, %v1278, %v1282
      %v1287 = vand.u32 2147483647, %v1208
      %vm1288 = vcmp.eq.f32.partialorder %v1287, 8.507059e+37
      %v1289 = vand.u32 %v1208, 2147483648
      %v1290 = vor.u32 1.1754944e-38, %v1289
      %v1291 = vsel %vm1288, %v1290, %v1286
      %v1292 = vmul.f32 %v1155, %v1291
      %v1293 = vrcp.pop %v1211
      %v1294 = vmul.f32 %v1211, %v1293
      %v1295 = vsub.f32 1.0, %v1294
      %v1296 = vmul.f32 %v1293, %v1295
      %v1297 = vadd.f32 %v1293, %v1296
      %vm1298 = vweird.f32 %v1211
      %vm1299 = vweird.f32 %v1293
      %vm1300 = vmor %vm1298, %vm1299
      %v1301 = vsel %vm1300, %v1293, %v1297
      %v1302 = vand.u32 2147483647, %v1211
      %vm1303 = vcmp.eq.f32.partialorder %v1302, 8.507059e+37
      %v1304 = vand.u32 %v1211, 2147483648
      %v1305 = vor.u32 1.1754944e-38, %v1304
      %v1306 = vsel %vm1303, %v1305, %v1301
      %v1307 = vmul.f32 %v1157, %v1306
      %v1308 = vrcp.pop %v1214
      %v1309 = vmul.f32 %v1214, %v1308
      %v1310 = vsub.f32 1.0, %v1309
      %v1311 = vmul.f32 %v1308, %v1310
      %v1312 = vadd.f32 %v1308, %v1311
      %vm1313 = vweird.f32 %v1214
      %vm1314 = vweird.f32 %v1308
      %vm1315 = vmor %vm1313, %vm1314
      %v1316 = vsel %vm1315, %v1308, %v1312
      %v1317 = vand.u32 2147483647, %v1214
      %vm1318 = vcmp.eq.f32.partialorder %v1317, 8.507059e+37
      %v1319 = vand.u32 %v1214, 2147483648
      %v1320 = vor.u32 1.1754944e-38, %v1319
      %v1321 = vsel %vm1318, %v1320, %v1316
      %v1322 = vmul.f32 %v1159, %v1321
      %v1323 = vrcp.pop %v1217
      %v1324 = vmul.f32 %v1217, %v1323
      %v1325 = vsub.f32 1.0, %v1324
      %v1326 = vmul.f32 %v1323, %v1325
      %v1327 = vadd.f32 %v1323, %v1326
      %vm1328 = vweird.f32 %v1217
      %vm1329 = vweird.f32 %v1323
      %vm1330 = vmor %vm1328, %vm1329
      %v1331 = vsel %vm1330, %v1323, %v1327
      %v1332 = vand.u32 2147483647, %v1217
      %vm1333 = vcmp.eq.f32.partialorder %v1332, 8.507059e+37
      %v1334 = vand.u32 %v1217, 2147483648
      %v1335 = vor.u32 1.1754944e-38, %v1334
      %v1336 = vsel %vm1333, %v1335, %v1331
      %v1337 = vmul.f32 %v1161, %v1336
      %vm1338 = vcmask 392448
      %v1339 = vsel %vm1338, %v897, -inf
      %1340 = vmax.xlane.f32.xlu0 %v1339
      %v1341 = vpop.xlane.xlu0 %1340
      %v1342 = vsel %vm1338, %v900, -inf
      %1343 = vmax.xlane.f32.xlu0 %v1342
      %v1344 = vpop.xlane.xlu0 %1343
      %v1345 = vsel %vm1338, %v903, -inf
      %1346 = vmax.xlane.f32.xlu0 %v1345
      %v1347 = vpop.xlane.xlu0 %1346
      %v1348 = vsel %vm1338, %v906, -inf
      %1349 = vmax.xlane.f32.xlu0 %v1348
      %v1350 = vpop.xlane.xlu0 %1349
      %v1351 = vsel %vm1338, %v909, -inf
      %1352 = vmax.xlane.f32.xlu0 %v1351
      %v1353 = vpop.xlane.xlu0 %1352
      %v1354 = vsel %vm1338, %v912, -inf
      %1355 = vmax.xlane.f32.xlu0 %v1354
      %v1356 = vpop.xlane.xlu0 %1355
      %v1357 = vsel %vm1338, %v915, -inf
      %1358 = vmax.xlane.f32.xlu0 %v1357
      %v1359 = vpop.xlane.xlu0 %1358
      %v1360 = vsel %vm1338, %v918, -inf
      %1361 = vmax.xlane.f32.xlu0 %v1360
      %v1362 = vpop.xlane.xlu0 %1361
      %v1363 = vsub.f32 %v897, %v1341
      %v1364 = vsub.f32 %v900, %v1344
      %v1365 = vsub.f32 %v903, %v1347
      %v1366 = vsub.f32 %v906, %v1350
      %v1367 = vsub.f32 %v909, %v1353
      %v1368 = vsub.f32 %v912, %v1356
      %v1369 = vsub.f32 %v915, %v1359
      %v1370 = vsub.f32 %v918, %v1362
      %v1371 = vmul.f32 %v1363, 1.442695
      %v1372 = vpow.pop %v1371
      %v1373 = vmul.f32 %v1364, 1.442695
      %v1374 = vpow.pop %v1373
      %v1375 = vmul.f32 %v1365, 1.442695
      %v1376 = vpow.pop %v1375
      %v1377 = vmul.f32 %v1366, 1.442695
      %v1378 = vpow.pop %v1377
      %v1379 = vmul.f32 %v1367, 1.442695
      %v1380 = vpow.pop %v1379
      %v1381 = vmul.f32 %v1368, 1.442695
      %v1382 = vpow.pop %v1381
      %v1383 = vmul.f32 %v1369, 1.442695
      %v1384 = vpow.pop %v1383
      %v1385 = vmul.f32 %v1370, 1.442695
      %v1386 = vpow.pop %v1385
      %1395 = vrot.lane.b32.xlu0 %v1372, 96
      %v1396 = vpop.permute.xlu0 %1395
      %1397 = vrot.lane.b32.xlu0 %v1374, 96
      %v1398 = vpop.permute.xlu0 %1397
      %1399 = vrot.lane.b32.xlu0 %v1376, 96
      %v1400 = vpop.permute.xlu0 %1399
      %1401 = vrot.lane.b32.xlu0 %v1378, 96
      %v1402 = vpop.permute.xlu0 %1401
      %1403 = vrot.lane.b32.xlu0 %v1380, 96
      %v1404 = vpop.permute.xlu0 %1403
      %1405 = vrot.lane.b32.xlu0 %v1382, 96
      %v1406 = vpop.permute.xlu0 %1405
      %1407 = vrot.lane.b32.xlu0 %v1384, 96
      %v1408 = vpop.permute.xlu0 %1407
      %1409 = vrot.lane.b32.xlu0 %v1386, 96
      %v1410 = vpop.permute.xlu0 %1409
      %v1419 = vsel %vm920, %v1396, 0.0
      %1420 = vadd.xlane.f32.xlu0 %v1419
      %v1421 = vpop.xlane.xlu0 %1420
      %v1422 = vsel %vm920, %v1398, 0.0
      %1423 = vadd.xlane.f32.xlu0 %v1422
      %v1424 = vpop.xlane.xlu0 %1423
      %v1425 = vsel %vm920, %v1400, 0.0
      %1426 = vadd.xlane.f32.xlu0 %v1425
      %v1427 = vpop.xlane.xlu0 %1426
      %v1428 = vsel %vm920, %v1402, 0.0
      %1429 = vadd.xlane.f32.xlu0 %v1428
      %v1430 = vpop.xlane.xlu0 %1429
      %v1431 = vsel %vm920, %v1404, 0.0
      %1432 = vadd.xlane.f32.xlu0 %v1431
      %v1433 = vpop.xlane.xlu0 %1432
      %v1434 = vsel %vm920, %v1406, 0.0
      %1435 = vadd.xlane.f32.xlu0 %v1434
      %v1436 = vpop.xlane.xlu0 %1435
      %v1437 = vsel %vm920, %v1408, 0.0
      %1438 = vadd.xlane.f32.xlu0 %v1437
      %v1439 = vpop.xlane.xlu0 %1438
      %v1440 = vsel %vm920, %v1410, 0.0
      %1441 = vadd.xlane.f32.xlu0 %v1440
      %v1442 = vpop.xlane.xlu0 %1441
      %v1443 = vrcp.pop %v1421
      %v1444 = vmul.f32 %v1421, %v1443
      %v1445 = vsub.f32 1.0, %v1444
      %v1446 = vmul.f32 %v1443, %v1445
      %v1447 = vadd.f32 %v1443, %v1446
      %vm1448 = vweird.f32 %v1421
      %vm1449 = vweird.f32 %v1443
      %vm1450 = vmor %vm1448, %vm1449
      %v1451 = vsel %vm1450, %v1443, %v1447
      %v1452 = vand.u32 2147483647, %v1421
      %vm1453 = vcmp.eq.f32.partialorder %v1452, 8.507059e+37
      %v1454 = vand.u32 %v1421, 2147483648
      %v1455 = vor.u32 1.1754944e-38, %v1454
      %v1456 = vsel %vm1453, %v1455, %v1451
      %v1457 = vmul.f32 %v1372, %v1456
      %v1458 = vrcp.pop %v1424
      %v1459 = vmul.f32 %v1424, %v1458
      %v1460 = vsub.f32 1.0, %v1459
      %v1461 = vmul.f32 %v1458, %v1460
      %v1462 = vadd.f32 %v1458, %v1461
      %vm1463 = vweird.f32 %v1424
      %vm1464 = vweird.f32 %v1458
      %vm1465 = vmor %vm1463, %vm1464
      %v1466 = vsel %vm1465, %v1458, %v1462
      %v1467 = vand.u32 2147483647, %v1424
      %vm1468 = vcmp.eq.f32.partialorder %v1467, 8.507059e+37
      %v1469 = vand.u32 %v1424, 2147483648
      %v1470 = vor.u32 1.1754944e-38, %v1469
      %v1471 = vsel %vm1468, %v1470, %v1466
      %v1472 = vmul.f32 %v1374, %v1471
      %v1473 = vrcp.pop %v1427
      %v1474 = vmul.f32 %v1427, %v1473
      %v1475 = vsub.f32 1.0, %v1474
      %v1476 = vmul.f32 %v1473, %v1475
      %v1477 = vadd.f32 %v1473, %v1476
      %vm1478 = vweird.f32 %v1427
      %vm1479 = vweird.f32 %v1473
      %vm1480 = vmor %vm1478, %vm1479
      %v1481 = vsel %vm1480, %v1473, %v1477
      %v1482 = vand.u32 2147483647, %v1427
      %vm1483 = vcmp.eq.f32.partialorder %v1482, 8.507059e+37
      %v1484 = vand.u32 %v1427, 2147483648
      %v1485 = vor.u32 1.1754944e-38, %v1484
      %v1486 = vsel %vm1483, %v1485, %v1481
      %v1487 = vmul.f32 %v1376, %v1486
      %v1488 = vrcp.pop %v1430
      %v1489 = vmul.f32 %v1430, %v1488
      %v1490 = vsub.f32 1.0, %v1489
      %v1491 = vmul.f32 %v1488, %v1490
      %v1492 = vadd.f32 %v1488, %v1491
      %vm1493 = vweird.f32 %v1430
      %vm1494 = vweird.f32 %v1488
      %vm1495 = vmor %vm1493, %vm1494
      %v1496 = vsel %vm1495, %v1488, %v1492
      %v1497 = vand.u32 2147483647, %v1430
      %vm1498 = vcmp.eq.f32.partialorder %v1497, 8.507059e+37
      %v1499 = vand.u32 %v1430, 2147483648
      %v1500 = vor.u32 1.1754944e-38, %v1499
      %v1501 = vsel %vm1498, %v1500, %v1496
      %v1502 = vmul.f32 %v1378, %v1501
      %v1503 = vrcp.pop %v1433
      %v1504 = vmul.f32 %v1433, %v1503
      %v1505 = vsub.f32 1.0, %v1504
      %v1506 = vmul.f32 %v1503, %v1505
      %v1507 = vadd.f32 %v1503, %v1506
      %vm1508 = vweird.f32 %v1433
      %vm1509 = vweird.f32 %v1503
      %vm1510 = vmor %vm1508, %vm1509
      %v1511 = vsel %vm1510, %v1503, %v1507
      %v1512 = vand.u32 2147483647, %v1433
      %vm1513 = vcmp.eq.f32.partialorder %v1512, 8.507059e+37
      %v1514 = vand.u32 %v1433, 2147483648
      %v1515 = vor.u32 1.1754944e-38, %v1514
      %v1516 = vsel %vm1513, %v1515, %v1511
      %v1517 = vmul.f32 %v1380, %v1516
      %v1518 = vrcp.pop %v1436
      %v1519 = vmul.f32 %v1436, %v1518
      %v1520 = vsub.f32 1.0, %v1519
      %v1521 = vmul.f32 %v1518, %v1520
      %v1522 = vadd.f32 %v1518, %v1521
      %vm1523 = vweird.f32 %v1436
      %vm1524 = vweird.f32 %v1518
      %vm1525 = vmor %vm1523, %vm1524
      %v1526 = vsel %vm1525, %v1518, %v1522
      %v1527 = vand.u32 2147483647, %v1436
      %vm1528 = vcmp.eq.f32.partialorder %v1527, 8.507059e+37
      %v1529 = vand.u32 %v1436, 2147483648
      %v1530 = vor.u32 1.1754944e-38, %v1529
      %v1531 = vsel %vm1528, %v1530, %v1526
      %v1532 = vmul.f32 %v1382, %v1531
      %v1533 = vrcp.pop %v1439
      %v1534 = vmul.f32 %v1439, %v1533
      %v1535 = vsub.f32 1.0, %v1534
      %v1536 = vmul.f32 %v1533, %v1535
      %v1537 = vadd.f32 %v1533, %v1536
      %vm1538 = vweird.f32 %v1439
      %vm1539 = vweird.f32 %v1533
      %vm1540 = vmor %vm1538, %vm1539
      %v1541 = vsel %vm1540, %v1533, %v1537
      %v1542 = vand.u32 2147483647, %v1439
      %vm1543 = vcmp.eq.f32.partialorder %v1542, 8.507059e+37
      %v1544 = vand.u32 %v1439, 2147483648
      %v1545 = vor.u32 1.1754944e-38, %v1544
      %v1546 = vsel %vm1543, %v1545, %v1541
      %v1547 = vmul.f32 %v1384, %v1546
      %v1548 = vrcp.pop %v1442
      %v1549 = vmul.f32 %v1442, %v1548
      %v1550 = vsub.f32 1.0, %v1549
      %v1551 = vmul.f32 %v1548, %v1550
      %v1552 = vadd.f32 %v1548, %v1551
      %vm1553 = vweird.f32 %v1442
      %vm1554 = vweird.f32 %v1548
      %vm1555 = vmor %vm1553, %vm1554
      %v1556 = vsel %vm1555, %v1548, %v1552
      %v1557 = vand.u32 2147483647, %v1442
      %vm1558 = vcmp.eq.f32.partialorder %v1557, 8.507059e+37
      %v1559 = vand.u32 %v1442, 2147483648
      %v1560 = vor.u32 1.1754944e-38, %v1559
      %v1561 = vsel %vm1558, %v1560, %v1556
      %v1562 = vmul.f32 %v1386, %v1561
      %vm1563 = vcmask 523648
      %v1564 = vsel %vm1563, %v897, -inf
      %1565 = vmax.xlane.f32.xlu0 %v1564
      %v1566 = vpop.xlane.xlu0 %1565
      %v1567 = vsel %vm1563, %v900, -inf
      %1568 = vmax.xlane.f32.xlu0 %v1567
      %v1569 = vpop.xlane.xlu0 %1568
      %v1570 = vsel %vm1563, %v903, -inf
      %1571 = vmax.xlane.f32.xlu0 %v1570
      %v1572 = vpop.xlane.xlu0 %1571
      %v1573 = vsel %vm1563, %v906, -inf
      %1574 = vmax.xlane.f32.xlu0 %v1573
      %v1575 = vpop.xlane.xlu0 %1574
      %v1576 = vsel %vm1563, %v909, -inf
      %1577 = vmax.xlane.f32.xlu0 %v1576
      %v1578 = vpop.xlane.xlu0 %1577
      %v1579 = vsel %vm1563, %v912, -inf
      %1580 = vmax.xlane.f32.xlu0 %v1579
      %v1581 = vpop.xlane.xlu0 %1580
      %v1582 = vsel %vm1563, %v915, -inf
      %1583 = vmax.xlane.f32.xlu0 %v1582
      %v1584 = vpop.xlane.xlu0 %1583
      %v1585 = vsel %vm1563, %v918, -inf
      %1586 = vmax.xlane.f32.xlu0 %v1585
      %v1587 = vpop.xlane.xlu0 %1586
      %v1588 = vsub.f32 %v897, %v1566
      %v1589 = vsub.f32 %v900, %v1569
      %v1590 = vsub.f32 %v903, %v1572
      %v1591 = vsub.f32 %v906, %v1575
      %v1592 = vsub.f32 %v909, %v1578
      %v1593 = vsub.f32 %v912, %v1581
      %v1594 = vsub.f32 %v915, %v1584
      %v1595 = vsub.f32 %v918, %v1587
      %v1596 = vmul.f32 %v1588, 1.442695
      %v1597 = vpow.pop %v1596
      %v1598 = vmul.f32 %v1589, 1.442695
      %v1599 = vpow.pop %v1598
      %v1600 = vmul.f32 %v1590, 1.442695
      %v1601 = vpow.pop %v1600
      %v1602 = vmul.f32 %v1591, 1.442695
      %v1603 = vpow.pop %v1602
      %v1604 = vmul.f32 %v1592, 1.442695
      %v1605 = vpow.pop %v1604
      %v1606 = vmul.f32 %v1593, 1.442695
      %v1607 = vpow.pop %v1606
      %v1608 = vmul.f32 %v1594, 1.442695
      %v1609 = vpow.pop %v1608
      %v1610 = vmul.f32 %v1595, 1.442695
      %v1611 = vpow.pop %v1610
      %1620 = vrot.lane.b32.xlu0 %v1597, 80
      %v1621 = vpop.permute.xlu0 %1620
      %1622 = vrot.lane.b32.xlu0 %v1599, 80
      %v1623 = vpop.permute.xlu0 %1622
      %1624 = vrot.lane.b32.xlu0 %v1601, 80
      %v1625 = vpop.permute.xlu0 %1624
      %1626 = vrot.lane.b32.xlu0 %v1603, 80
      %v1627 = vpop.permute.xlu0 %1626
      %1628 = vrot.lane.b32.xlu0 %v1605, 80
      %v1629 = vpop.permute.xlu0 %1628
      %1630 = vrot.lane.b32.xlu0 %v1607, 80
      %v1631 = vpop.permute.xlu0 %1630
      %1632 = vrot.lane.b32.xlu0 %v1609, 80
      %v1633 = vpop.permute.xlu0 %1632
      %1634 = vrot.lane.b32.xlu0 %v1611, 80
      %v1635 = vpop.permute.xlu0 %1634
      %v1644 = vsel %vm920, %v1621, 0.0
      %1645 = vadd.xlane.f32.xlu0 %v1644
      %v1646 = vpop.xlane.xlu0 %1645
      %v1647 = vsel %vm920, %v1623, 0.0
      %1648 = vadd.xlane.f32.xlu0 %v1647
      %v1649 = vpop.xlane.xlu0 %1648
      %v1650 = vsel %vm920, %v1625, 0.0
      %1651 = vadd.xlane.f32.xlu0 %v1650
      %v1652 = vpop.xlane.xlu0 %1651
      %v1653 = vsel %vm920, %v1627, 0.0
      %1654 = vadd.xlane.f32.xlu0 %v1653
      %v1655 = vpop.xlane.xlu0 %1654
      %v1656 = vsel %vm920, %v1629, 0.0
      %1657 = vadd.xlane.f32.xlu0 %v1656
      %v1658 = vpop.xlane.xlu0 %1657
      %v1659 = vsel %vm920, %v1631, 0.0
      %1660 = vadd.xlane.f32.xlu0 %v1659
      %v1661 = vpop.xlane.xlu0 %1660
      %v1662 = vsel %vm920, %v1633, 0.0
      %1663 = vadd.xlane.f32.xlu0 %v1662
      %v1664 = vpop.xlane.xlu0 %1663
      %v1665 = vsel %vm920, %v1635, 0.0
      %1666 = vadd.xlane.f32.xlu0 %v1665
      %v1667 = vpop.xlane.xlu0 %1666
      %v1668 = vrcp.pop %v1646
      %v1669 = vmul.f32 %v1646, %v1668
      %v1670 = vsub.f32 1.0, %v1669
      %v1671 = vmul.f32 %v1668, %v1670
      %v1672 = vadd.f32 %v1668, %v1671
      %vm1673 = vweird.f32 %v1646
      %vm1674 = vweird.f32 %v1668
      %vm1675 = vmor %vm1673, %vm1674
      %v1676 = vsel %vm1675, %v1668, %v1672
      %v1677 = vand.u32 2147483647, %v1646
      %vm1678 = vcmp.eq.f32.partialorder %v1677, 8.507059e+37
      %v1679 = vand.u32 %v1646, 2147483648
      %v1680 = vor.u32 1.1754944e-38, %v1679
      %v1681 = vsel %vm1678, %v1680, %v1676
      %v1682 = vmul.f32 %v1597, %v1681
      %v1683 = vrcp.pop %v1649
      %v1684 = vmul.f32 %v1649, %v1683
      %v1685 = vsub.f32 1.0, %v1684
      %v1686 = vmul.f32 %v1683, %v1685
      %v1687 = vadd.f32 %v1683, %v1686
      %vm1688 = vweird.f32 %v1649
      %vm1689 = vweird.f32 %v1683
      %vm1690 = vmor %vm1688, %vm1689
      %v1691 = vsel %vm1690, %v1683, %v1687
      %v1692 = vand.u32 2147483647, %v1649
      %vm1693 = vcmp.eq.f32.partialorder %v1692, 8.507059e+37
      %v1694 = vand.u32 %v1649, 2147483648
      %v1695 = vor.u32 1.1754944e-38, %v1694
      %v1696 = vsel %vm1693, %v1695, %v1691
      %v1697 = vmul.f32 %v1599, %v1696
      %v1698 = vrcp.pop %v1652
      %v1699 = vmul.f32 %v1652, %v1698
      %v1700 = vsub.f32 1.0, %v1699
      %v1701 = vmul.f32 %v1698, %v1700
      %v1702 = vadd.f32 %v1698, %v1701
      %vm1703 = vweird.f32 %v1652
      %vm1704 = vweird.f32 %v1698
      %vm1705 = vmor %vm1703, %vm1704
      %v1706 = vsel %vm1705, %v1698, %v1702
      %v1707 = vand.u32 2147483647, %v1652
      %vm1708 = vcmp.eq.f32.partialorder %v1707, 8.507059e+37
      %v1709 = vand.u32 %v1652, 2147483648
      %v1710 = vor.u32 1.1754944e-38, %v1709
      %v1711 = vsel %vm1708, %v1710, %v1706
      %v1712 = vmul.f32 %v1601, %v1711
      %v1713 = vrcp.pop %v1655
      %v1714 = vmul.f32 %v1655, %v1713
      %v1715 = vsub.f32 1.0, %v1714
      %v1716 = vmul.f32 %v1713, %v1715
      %v1717 = vadd.f32 %v1713, %v1716
      %vm1718 = vweird.f32 %v1655
      %vm1719 = vweird.f32 %v1713
      %vm1720 = vmor %vm1718, %vm1719
      %v1721 = vsel %vm1720, %v1713, %v1717
      %v1722 = vand.u32 2147483647, %v1655
      %vm1723 = vcmp.eq.f32.partialorder %v1722, 8.507059e+37
      %v1724 = vand.u32 %v1655, 2147483648
      %v1725 = vor.u32 1.1754944e-38, %v1724
      %v1726 = vsel %vm1723, %v1725, %v1721
      %v1727 = vmul.f32 %v1603, %v1726
      %v1728 = vrcp.pop %v1658
      %v1729 = vmul.f32 %v1658, %v1728
      %v1730 = vsub.f32 1.0, %v1729
      %v1731 = vmul.f32 %v1728, %v1730
      %v1732 = vadd.f32 %v1728, %v1731
      %vm1733 = vweird.f32 %v1658
      %vm1734 = vweird.f32 %v1728
      %vm1735 = vmor %vm1733, %vm1734
      %v1736 = vsel %vm1735, %v1728, %v1732
      %v1737 = vand.u32 2147483647, %v1658
      %vm1738 = vcmp.eq.f32.partialorder %v1737, 8.507059e+37
      %v1739 = vand.u32 %v1658, 2147483648
      %v1740 = vor.u32 1.1754944e-38, %v1739
      %v1741 = vsel %vm1738, %v1740, %v1736
      %v1742 = vmul.f32 %v1605, %v1741
      %v1743 = vrcp.pop %v1661
      %v1744 = vmul.f32 %v1661, %v1743
      %v1745 = vsub.f32 1.0, %v1744
      %v1746 = vmul.f32 %v1743, %v1745
      %v1747 = vadd.f32 %v1743, %v1746
      %vm1748 = vweird.f32 %v1661
      %vm1749 = vweird.f32 %v1743
      %vm1750 = vmor %vm1748, %vm1749
      %v1751 = vsel %vm1750, %v1743, %v1747
      %v1752 = vand.u32 2147483647, %v1661
      %vm1753 = vcmp.eq.f32.partialorder %v1752, 8.507059e+37
      %v1754 = vand.u32 %v1661, 2147483648
      %v1755 = vor.u32 1.1754944e-38, %v1754
      %v1756 = vsel %vm1753, %v1755, %v1751
      %v1757 = vmul.f32 %v1607, %v1756
      %v1758 = vrcp.pop %v1664
      %v1759 = vmul.f32 %v1664, %v1758
      %v1760 = vsub.f32 1.0, %v1759
      %v1761 = vmul.f32 %v1758, %v1760
      %v1762 = vadd.f32 %v1758, %v1761
      %vm1763 = vweird.f32 %v1664
      %vm1764 = vweird.f32 %v1758
      %vm1765 = vmor %vm1763, %vm1764
      %v1766 = vsel %vm1765, %v1758, %v1762
      %v1767 = vand.u32 2147483647, %v1664
      %vm1768 = vcmp.eq.f32.partialorder %v1767, 8.507059e+37
      %v1769 = vand.u32 %v1664, 2147483648
      %v1770 = vor.u32 1.1754944e-38, %v1769
      %v1771 = vsel %vm1768, %v1770, %v1766
      %v1772 = vmul.f32 %v1609, %v1771
      %v1773 = vrcp.pop %v1667
      %v1774 = vmul.f32 %v1667, %v1773
      %v1775 = vsub.f32 1.0, %v1774
      %v1776 = vmul.f32 %v1773, %v1775
      %v1777 = vadd.f32 %v1773, %v1776
      %vm1778 = vweird.f32 %v1667
      %vm1779 = vweird.f32 %v1773
      %vm1780 = vmor %vm1778, %vm1779
      %v1781 = vsel %vm1780, %v1773, %v1777
      %v1782 = vand.u32 2147483647, %v1667
      %vm1783 = vcmp.eq.f32.partialorder %v1782, 8.507059e+37
      %v1784 = vand.u32 %v1667, 2147483648
      %v1785 = vor.u32 1.1754944e-38, %v1784
      %v1786 = vsel %vm1783, %v1785, %v1781
      %v1787 = vmul.f32 %v1611, %v1786
      %v1788 = vsel %vm920, %v1007, %v1232
      %v1789 = vsel %vm920, %v1022, %v1247
      %v1790 = vsel %vm920, %v1037, %v1262
      %v1791 = vsel %vm920, %v1052, %v1277
      %v1792 = vsel %vm920, %v1067, %v1292
      %v1793 = vsel %vm920, %v1082, %v1307
      %v1794 = vsel %vm920, %v1097, %v1322
      %v1795 = vsel %vm920, %v1112, %v1337
      %v1796 = vsel %vm700, %v1788, %v1457
      %v1797 = vsel %vm700, %v1789, %v1472
      %v1798 = vsel %vm700, %v1790, %v1487
      %v1799 = vsel %vm700, %v1791, %v1502
      %v1800 = vsel %vm700, %v1792, %v1517
      %v1801 = vsel %vm700, %v1793, %v1532
      %v1802 = vsel %vm700, %v1794, %v1547
      %v1803 = vsel %vm700, %v1795, %v1562
      %vm1804 = vcmask 392192
      %v1805 = vsel %vm1804, %v1796, %v1682
      %v1806 = vsel %vm1804, %v1797, %v1697
      %v1807 = vsel %vm1804, %v1798, %v1712
      %v1808 = vsel %vm1804, %v1799, %v1727
      %v1809 = vsel %vm1804, %v1800, %v1742
      %v1810 = vsel %vm1804, %v1801, %v1757
      %v1811 = vsel %vm1804, %v1802, %v1772
      %v1812 = vsel %vm1804, %v1803, %v1787
      %1813 = vst.msk [vmem:[%s442] sm:$0xff] %vm464, %v1805
      %1814 = vst.msk [vmem:[%s442 + $0x8] sm:$0xff] %vm464, %v1806
      %1815 = vst.msk [vmem:[%s442 + $0x10] sm:$0xff] %vm464, %v1807
      %1816 = vst.msk [vmem:[%s442 + $0x18] sm:$0xff] %vm464, %v1808
      %1817 = vst.msk [vmem:[%s442 + $0x20] sm:$0xff] %vm464, %v1809
      %1818 = vst.msk [vmem:[%s442 + $0x28] sm:$0xff] %vm464, %v1810
      %1819 = vst.msk [vmem:[%s442 + $0x30] sm:$0xff] %vm464, %v1811
      %1820 = vst.msk [vmem:[%s442 + $0x38] sm:$0xff] %vm464, %v1812
      %s1821 = smul.u32 8, %s24
      %p1822 = scmp.lt.s32.totalorder %s1821, 15
      %s1823 = scalar_select %p1822, %s1821, 15
      %s1824 = smul.addr %s1823, 8
      %s1825 = scalar_lea.vmem %s13, %s1824
      // Predicated region
      $region73: #{tpu_custom_call.1} parent=71 // pred_check
        %p1826 = pneg %p320
      $region74: #{tpu_custom_call.1} parent=71 // pred_check_branch
        %1828 = sbr.rel (%p1826) target = $region76
      $region75: #{tpu_custom_call.1} parent=71 // pred_region
        %s1829 = smul.u32 8, %s24
      $region76: #{tpu_custom_call.1} parent=71 // pred_fallthru
        _
    $region72: #{tpu_custom_call.1} parent=5 // pred_fallthru
      _
    %p1830 = scmp.le.s32.totalorder 2, %s19
    // Predicated region
    $region77: #{tpu_custom_call.1} parent=5 // pred_check
      %p1831 = pneg %p1830
    $region78: #{tpu_custom_call.1} parent=5 // pred_check_branch
      %1833 = sbr.rel (%p1831) target = $region80
    $region79: #{tpu_custom_call.1} parent=5 // pred_region
      %s1834 = ssub.s32 %s19, 2
      // Predicated region
      $region81: #{tpu_custom_call.1} parent=79 // pred_check
        %p1835 = pneg %p326
      $region82: #{tpu_custom_call.1} parent=79 // pred_check_branch
        %1837 = sbr.rel (%p1835) target = $region84
      $region83: #{tpu_custom_call.1} parent=79 // pred_region
        %s1838 = smul.u32 8, %s25
        %p1839 = scmp.lt.s32.totalorder %s1838, 15
        %s1840 = scalar_select %p1839, %s1838, 15
        %s1841 = smul.addr %s1840, 8
        %s1842 = scalar_lea.vmem %s13, %s1841
      $region84: #{tpu_custom_call.1} parent=79 // pred_fallthru
        _
    $region80: #{tpu_custom_call.1} parent=5 // pred_fallthru
      _
  $region6: #{tpu_custom_call.1} parent=0 // loop_footer
    %s23 = sadd.s32 1, %s19
  $region7: #{tpu_custom_call.1} parent=0 // loop_footer_branch
    %18 = sbr.rel target = $region3
  $region8: #{tpu_custom_call.1} parent=0 // loop_exit
    _

</llo_original>
